<compile_context>
chip_gen: v5e
topology: v5e:2x2
jax: 0.10.0
libtpu: 0.0.40
codegen_flags: <defaults>
</compile_context>

<pallas_src>
import functools

import jax
import jax.numpy as jnp
from jax.experimental import pallas as pl
from jax.experimental.pallas import tpu as pltpu


def _se_basic_block_kernel(xpad_ref, mask_ref, w1_ref, b1_ref,
                           w2_ref, b2_ref, fc1_ref, fc2_ref, o_ref,
                           *, W, P_pad):
    # xpad_ref : (1, C, P_pad) f32  zero-padded input (pad ring + lane pad), spatial on lanes
    # mask_ref : (1, P_pad)    f32  1.0 at interior positions, 0.0 on pad ring / lane pad
    # w1/w2    : (C, 9*C)      bf16 conv weights with BN scale folded in, cols ordered (kh, kw, cin)
    # b1/b2    : (C, 1)        f32  folded BN shift (per output channel)
    # fc1_ref  : (C, Cr)       f32  SE fc1 weight transposed (in x out), 1/(H*W) folded in
    # fc2_ref  : (C, Cr)       f32  SE fc2 weight, PyTorch layout (out x in)
    # o_ref    : (1, C, P_pad)      output (pad-ring / lane-pad positions hold garbage)
    Wp = W + 2
    x = xpad_ref[0]            # (C, P_pad) f32 — interior also serves as the residual
    mask = mask_ref[...]       # (1, P_pad)

    def tap(v, s):
        # Want result[:, p] = v[:, (p + s) % P_pad].  pltpu.roll follows jnp.roll
        # semantics (result[i] = v[i - shift]), so shift = (-s) mod P_pad.
        # For interior output positions the tap index never wraps (pad=1, 3x3,
        # stride=1), so wrap-around only lands on the discarded pad ring.
        r = (-s) % P_pad
        return v if r == 0 else pltpu.roll(v, r, axis=1)

    def conv3x3(v_f32, w_ref):
        # im2col: stack the 9 shifted taps -> (9*C, P_pad); one MXU matmul, K = 9*C.
        taps = [tap(v_f32, (kh - 1) * Wp + (kw - 1))
                for kh in range(3) for kw in range(3)]
        im2col = jnp.concatenate(taps, axis=0).astype(jnp.bfloat16)   # (9C, P_pad)
        return jnp.dot(w_ref[...], im2col,
                       preferred_element_type=jnp.float32)            # (C, P_pad) f32

    # ---- conv1 (bn1 scale folded) + shift -> relu; zero pad ring = conv2 padding ----
    out1 = jnp.maximum(conv3x3(x, w1_ref) + b1_ref[...], 0.0) * mask

    # ---- conv2 (bn2 scale folded) + shift ----
    out2 = conv3x3(out1, w2_ref) + b2_ref[...]

    # ---- SE: masked global pool (1/(H*W) folded into fc1) -> fc1 -> relu -> fc2 -> sigmoid ----
    # Tiny fcs (Cr = C/16) stay on the VPU/XLU (broadcast-mul + reduce), not the MXU.
    y = jnp.sum(out2 * mask, axis=1, keepdims=True)                            # (C, 1)
    h = jnp.maximum(jnp.sum(fc1_ref[...] * y, axis=0, keepdims=True), 0.0)     # (1, Cr)
    scale = jax.nn.sigmoid(jnp.sum(fc2_ref[...] * h, axis=1, keepdims=True))   # (C, 1)

    # ---- SE scale + residual add + relu; garbage lanes sliced off outside ----
    o_ref[0] = jnp.maximum(out2 * scale + x, 0.0).astype(o_ref.dtype)


def se_basic_block_pallas(x_nchw, params):
    """x_nchw: (B, C, H, W) float32 — same convention as the PyTorch module."""
    B, C, H, W = x_nchw.shape
    P = (H + 2) * (W + 2)
    P_pad = ((P + 127) // 128) * 128          # lane-align the flattened spatial axis
    eps = 1e-5

    # --- glue (plain JAX, outside the kernel): pad + flatten spatial, fold params ---
    x_pad = jnp.pad(x_nchw, ((0, 0), (0, 0), (1, 1), (1, 1))).reshape(B, C, P)
    x_pad = jnp.pad(x_pad, ((0, 0), (0, 0), (0, P_pad - P)))          # zero lane pad

    def fold_bn(gamma, beta, mean, var):
        scale = gamma / jnp.sqrt(var + eps)
        shift = beta - mean * scale
        return scale, shift

    s1, b1 = fold_bn(params["bn1_gamma"], params["bn1_beta"],
                     params["bn1_mean"], params["bn1_var"])
    s2, b2 = fold_bn(params["bn2_gamma"], params["bn2_beta"],
                     params["bn2_mean"], params["bn2_var"])

    def fold_conv(w, scale):
        # PyTorch (O, I, 3, 3) -> (O, 3, 3, I) -> (O, 9*I); fold the per-output-channel
        # BN scale into the rows BEFORE the bf16 cast (scale is linear in the matmul).
        w = jnp.transpose(w, (0, 2, 3, 1)).reshape(C, 9 * C)
        return (w * scale[:, None]).astype(jnp.bfloat16)

    w1 = fold_conv(params["conv1_w"], s1)
    w2 = fold_conv(params["conv2_w"], s2)
    b1 = b1.reshape(C, 1)
    b2 = b2.reshape(C, 1)

    fc1_t = jnp.transpose(params["fc1_w"], (1, 0)) * (1.0 / (H * W))   # (C, Cr), avg folded
    fc2 = params["fc2_w"]                                              # (C, Cr)
    Cr = fc1_t.shape[1]

    # 0/1 interior mask over the padded + lane-padded flattened spatial axis.
    mask = (jnp.zeros((H + 2, W + 2), jnp.float32)
            .at[1:H + 1, 1:W + 1].set(1.0).reshape(1, P))
    mask = jnp.pad(mask, ((0, 0), (0, P_pad - P)))                     # zeros in lane pad

    kernel = functools.partial(_se_basic_block_kernel, W=W, P_pad=P_pad)
    full = lambda shape: pl.BlockSpec(shape, lambda b: (0,) * len(shape))

    out_flat = pl.pallas_call(
        kernel,
        out_shape=jax.ShapeDtypeStruct((B, C, P_pad), x_nchw.dtype),
        grid=(B,),
        in_specs=[
            pl.BlockSpec((1, C, P_pad), lambda b: (b, 0, 0)),
            full((1, P_pad)),
            full((C, 9 * C)), full((C, 1)),
            full((C, 9 * C)), full((C, 1)),
            full((C, Cr)),
            full((C, Cr)),
        ],
        out_specs=pl.BlockSpec((1, C, P_pad), lambda b: (b, 0, 0)),
        compiler_params=pltpu.CompilerParams(dimension_semantics=("parallel",)),
    )(x_pad, mask, w1, b1, w2, b2, fc1_t, fc2)

    # Drop lane pad + pad ring -> (B, C, H, W) NCHW (no transposes anywhere).
    return (out_flat[:, :, :P]
            .reshape(B, C, H + 2, W + 2)[:, :, 1:H + 1, 1:W + 1])


def se_basic_block_ref(x, p):
    """Pure-JAX f32 reference in NCHW mirroring the PyTorch forward (BN inference)."""
    eps = 1e-5

    def conv3x3(x, w):
        return jax.lax.conv_general_dilated(
            x, w, window_strides=(1, 1), padding=((1, 1), (1, 1)),
            dimension_numbers=("NCHW", "OIHW", "NCHW"),
            precision=jax.lax.Precision.HIGHEST)

    def bn(x, gamma, beta, mean, var):
        scale = gamma / jnp.sqrt(var + eps)
        shift = beta - mean * scale
        return x * scale[None, :, None, None] + shift[None, :, None, None]

    residual = x
    out = conv3x3(x, p["conv1_w"])
    out = jax.nn.relu(bn(out, p["bn1_gamma"], p["bn1_beta"], p["bn1_mean"], p["bn1_var"]))
    out = conv3x3(out, p["conv2_w"])
    out = bn(out, p["bn2_gamma"], p["bn2_beta"], p["bn2_mean"], p["bn2_var"])
    y = jnp.mean(out, axis=(2, 3))                                # (B, C)
    y = jax.nn.relu(y @ p["fc1_w"].T)
    y = jax.nn.sigmoid(y @ p["fc2_w"].T)
    out = out * y[:, :, None, None]
    return jax.nn.relu(out + residual)


def make_params(key, inplanes, planes, reduction=16):
    assert inplanes == planes, "no-downsample SEBasicBlock requires inplanes == planes"
    C, Cr = planes, planes // reduction
    ks = jax.random.split(key, 12)
    return {
        "conv1_w": 0.05 * jax.random.normal(ks[0], (C, inplanes, 3, 3), jnp.float32),
        "conv2_w": 0.05 * jax.random.normal(ks[1], (C, C, 3, 3), jnp.float32),
        "bn1_gamma": 1.0 + 0.1 * jax.random.normal(ks[2], (C,), jnp.float32),
        "bn1_beta": 0.1 * jax.random.normal(ks[3], (C,), jnp.float32),
        "bn1_mean": 0.05 * jax.random.normal(ks[4], (C,), jnp.float32),
        "bn1_var": jax.random.uniform(ks[5], (C,), jnp.float32, 0.5, 1.5),
        "bn2_gamma": 1.0 + 0.1 * jax.random.normal(ks[6], (C,), jnp.float32),
        "bn2_beta": 0.1 * jax.random.normal(ks[7], (C,), jnp.float32),
        "bn2_mean": 0.05 * jax.random.normal(ks[8], (C,), jnp.float32),
        "bn2_var": jax.random.uniform(ks[9], (C,), jnp.float32, 0.5, 1.5),
        "fc1_w": 0.1 * jax.random.normal(ks[10], (Cr, C), jnp.float32),  # Linear(C -> Cr)
        "fc2_w": 0.1 * jax.random.normal(ks[11], (C, Cr), jnp.float32),  # Linear(Cr -> C)
    }


if __name__ == "__main__":
    B, C, H, W = 2, 32, 16, 16         # inplanes = planes = 32, reduction = 16 -> Cr = 2
    key = jax.random.PRNGKey(0)
    kx, kp = jax.random.split(key)
    x = jax.random.normal(kx, (B, C, H, W), jnp.float32)
    params = make_params(kp, C, C, reduction=16)

    out = jax.block_until_ready(se_basic_block_pallas(x, params))
    ref = jax.block_until_ready(se_basic_block_ref(x, params))

    assert out.shape == (B, C, H, W)
    err = float(jnp.max(jnp.abs(out - ref)))
    # Tolerance accounts for bf16 MXU operands (with BN scale folded in) vs f32 reference.
    if err < 5e-2:
        print("KERNEL_OK")
    else:
        print(f"MISMATCH max_abs_err={err}")
</pallas_src>

<mosaic_0001>
module attributes {stable_mosaic.version = 11 : i64} {
  func.func @_se_basic_block_kernel(%arg0: i32, %arg1: memref<1x32x384xf32, #tpu.memory_space<vmem>>, %arg2: memref<1x384xf32, #tpu.memory_space<vmem>>, %arg3: memref<32x288xbf16, #tpu.memory_space<vmem>>, %arg4: memref<32x1xf32, #tpu.memory_space<vmem>>, %arg5: memref<32x288xbf16, #tpu.memory_space<vmem>>, %arg6: memref<32x1xf32, #tpu.memory_space<vmem>>, %arg7: memref<32x2xf32, #tpu.memory_space<vmem>>, %arg8: memref<32x2xf32, #tpu.memory_space<vmem>>, %arg9: memref<1x32x384xf32, #tpu.memory_space<vmem>>) attributes {dimension_semantics = [#tpu.dimension_semantics<parallel>], iteration_bounds = array<i64: 2>, scalar_prefetch = 0 : i64, scratch_operands = 0 : i64, tpu.core_type = #tpu.core_type<tc>, window_params = [{transform_indices = @transform_0, window_bounds = array<i64: 1, 32, 384>}, {pipeline_mode = #tpu.pipeline_mode<synchronous>, transform_indices = @transform_1, window_bounds = array<i64: 1, 384>}, {pipeline_mode = #tpu.pipeline_mode<synchronous>, transform_indices = @transform_2, window_bounds = array<i64: 32, 288>}, {pipeline_mode = #tpu.pipeline_mode<synchronous>, transform_indices = @transform_3, window_bounds = array<i64: 32, 1>}, {pipeline_mode = #tpu.pipeline_mode<synchronous>, transform_indices = @transform_4, window_bounds = array<i64: 32, 288>}, {pipeline_mode = #tpu.pipeline_mode<synchronous>, transform_indices = @transform_5, window_bounds = array<i64: 32, 1>}, {pipeline_mode = #tpu.pipeline_mode<synchronous>, transform_indices = @transform_6, window_bounds = array<i64: 32, 2>}, {pipeline_mode = #tpu.pipeline_mode<synchronous>, transform_indices = @transform_7, window_bounds = array<i64: 32, 2>}, {transform_indices = @transform_8, window_bounds = array<i64: 1, 32, 384>}]} {
    %c0 = arith.constant 0 : index
    %c0_0 = arith.constant 0 : index
    %c0_1 = arith.constant 0 : index
    %0 = vector.load %arg1[%c0, %c0_0, %c0_1] : memref<1x32x384xf32, #tpu.memory_space<vmem>>, vector<1x32x384xf32>
    %1 = vector.shape_cast %0 : vector<1x32x384xf32> to vector<32x384xf32>
    %c0_2 = arith.constant 0 : index
    %c0_3 = arith.constant 0 : index
    %2 = vector.load %arg2[%c0_2, %c0_3] : memref<1x384xf32, #tpu.memory_space<vmem>>, vector<1x384xf32>
    %c19_i32 = arith.constant 19 : i32
    %3 = tpu.dynamic_rotate %1 by %c19_i32 dim 1 : vector<32x384xf32>, i32 -> vector<32x384xf32>
    %c18_i32 = arith.constant 18 : i32
    %4 = tpu.dynamic_rotate %1 by %c18_i32 dim 1 : vector<32x384xf32>, i32 -> vector<32x384xf32>
    %c17_i32 = arith.constant 17 : i32
    %5 = tpu.dynamic_rotate %1 by %c17_i32 dim 1 : vector<32x384xf32>, i32 -> vector<32x384xf32>
    %c1_i32 = arith.constant 1 : i32
    %6 = tpu.dynamic_rotate %1 by %c1_i32 dim 1 : vector<32x384xf32>, i32 -> vector<32x384xf32>
    %c383_i32 = arith.constant 383 : i32
    %7 = tpu.dynamic_rotate %1 by %c383_i32 dim 1 : vector<32x384xf32>, i32 -> vector<32x384xf32>
    %c367_i32 = arith.constant 367 : i32
    %8 = tpu.dynamic_rotate %1 by %c367_i32 dim 1 : vector<32x384xf32>, i32 -> vector<32x384xf32>
    %c366_i32 = arith.constant 366 : i32
    %9 = tpu.dynamic_rotate %1 by %c366_i32 dim 1 : vector<32x384xf32>, i32 -> vector<32x384xf32>
    %c365_i32 = arith.constant 365 : i32
    %10 = tpu.dynamic_rotate %1 by %c365_i32 dim 1 : vector<32x384xf32>, i32 -> vector<32x384xf32>
    %11 = tpu.concatenate %3, %4, %5, %6, %1, %7, %8, %9, %10 in 0 : vector<32x384xf32>, vector<32x384xf32>, vector<32x384xf32>, vector<32x384xf32>, vector<32x384xf32>, vector<32x384xf32>, vector<32x384xf32>, vector<32x384xf32>, vector<32x384xf32> -> vector<288x384xf32>
    %12 = arith.truncf %11 : vector<288x384xf32> to vector<288x384xbf16>
    %c0_4 = arith.constant 0 : index
    %c0_5 = arith.constant 0 : index
    %13 = vector.load %arg3[%c0_4, %c0_5] : memref<32x288xbf16, #tpu.memory_space<vmem>>, vector<32x288xbf16>
    %cst = arith.constant dense<0.000000e+00> : vector<32x384xf32>
    %14 = tpu.matmul %13, %12, %cst {dimension_numbers = #tpu.dot_dimension_numbers<[1], [0], [0], [1], [0, 0, 1, 1], [], []>} : vector<32x288xbf16>, vector<288x384xbf16>, vector<32x384xf32> -> vector<32x384xf32>
    %c0_6 = arith.constant 0 : index
    %c0_7 = arith.constant 0 : index
    %15 = vector.load %arg4[%c0_6, %c0_7] : memref<32x1xf32, #tpu.memory_space<vmem>>, vector<32x1xf32>
    %16 = vector.broadcast %15 : vector<32x1xf32> to vector<32x384xf32>
    %17 = arith.addf %14, %16 : vector<32x384xf32>
    %cst_8 = arith.constant 0.000000e+00 : f32
    %18 = vector.broadcast %cst_8 : f32 to vector<32x384xf32>
    %19 = arith.maximumf %17, %18 : vector<32x384xf32>
    %20 = vector.broadcast %2 : vector<1x384xf32> to vector<32x384xf32>
    %21 = arith.mulf %19, %20 : vector<32x384xf32>
    %c19_i32_9 = arith.constant 19 : i32
    %22 = tpu.dynamic_rotate %21 by %c19_i32_9 dim 1 : vector<32x384xf32>, i32 -> vector<32x384xf32>
    %c18_i32_10 = arith.constant 18 : i32
    %23 = tpu.dynamic_rotate %21 by %c18_i32_10 dim 1 : vector<32x384xf32>, i32 -> vector<32x384xf32>
    %c17_i32_11 = arith.constant 17 : i32
    %24 = tpu.dynamic_rotate %21 by %c17_i32_11 dim 1 : vector<32x384xf32>, i32 -> vector<32x384xf32>
    %c1_i32_12 = arith.constant 1 : i32
    %25 = tpu.dynamic_rotate %21 by %c1_i32_12 dim 1 : vector<32x384xf32>, i32 -> vector<32x384xf32>
    %c383_i32_13 = arith.constant 383 : i32
    %26 = tpu.dynamic_rotate %21 by %c383_i32_13 dim 1 : vector<32x384xf32>, i32 -> vector<32x384xf32>
    %c367_i32_14 = arith.constant 367 : i32
    %27 = tpu.dynamic_rotate %21 by %c367_i32_14 dim 1 : vector<32x384xf32>, i32 -> vector<32x384xf32>
    %c366_i32_15 = arith.constant 366 : i32
    %28 = tpu.dynamic_rotate %21 by %c366_i32_15 dim 1 : vector<32x384xf32>, i32 -> vector<32x384xf32>
    %c365_i32_16 = arith.constant 365 : i32
    %29 = tpu.dynamic_rotate %21 by %c365_i32_16 dim 1 : vector<32x384xf32>, i32 -> vector<32x384xf32>
    %30 = tpu.concatenate %22, %23, %24, %25, %21, %26, %27, %28, %29 in 0 : vector<32x384xf32>, vector<32x384xf32>, vector<32x384xf32>, vector<32x384xf32>, vector<32x384xf32>, vector<32x384xf32>, vector<32x384xf32>, vector<32x384xf32>, vector<32x384xf32> -> vector<288x384xf32>
    %31 = arith.truncf %30 : vector<288x384xf32> to vector<288x384xbf16>
    %c0_17 = arith.constant 0 : index
    %c0_18 = arith.constant 0 : index
    %32 = vector.load %arg5[%c0_17, %c0_18] : memref<32x288xbf16, #tpu.memory_space<vmem>>, vector<32x288xbf16>
    %cst_19 = arith.constant dense<0.000000e+00> : vector<32x384xf32>
    %33 = tpu.matmul %32, %31, %cst_19 {dimension_numbers = #tpu.dot_dimension_numbers<[1], [0], [0], [1], [0, 0, 1, 1], [], []>} : vector<32x288xbf16>, vector<288x384xbf16>, vector<32x384xf32> -> vector<32x384xf32>
    %c0_20 = arith.constant 0 : index
    %c0_21 = arith.constant 0 : index
    %34 = vector.load %arg6[%c0_20, %c0_21] : memref<32x1xf32, #tpu.memory_space<vmem>>, vector<32x1xf32>
    %35 = vector.broadcast %34 : vector<32x1xf32> to vector<32x384xf32>
    %36 = arith.addf %33, %35 : vector<32x384xf32>
    %37 = vector.broadcast %2 : vector<1x384xf32> to vector<32x384xf32>
    %38 = arith.mulf %36, %37 : vector<32x384xf32>
    %cst_22 = arith.constant dense<0.000000e+00> : vector<32xf32>
    %39 = vector.multi_reduction <add>, %38, %cst_22 [1] : vector<32x384xf32> to vector<32xf32>
    %40 = vector.shape_cast %39 : vector<32xf32> to vector<32x1xf32>
    %c0_23 = arith.constant 0 : index
    %c0_24 = arith.constant 0 : index
    %41 = vector.load %arg7[%c0_23, %c0_24] : memref<32x2xf32, #tpu.memory_space<vmem>>, vector<32x2xf32>
    %42 = vector.broadcast %40 : vector<32x1xf32> to vector<32x2xf32>
    %43 = arith.mulf %41, %42 : vector<32x2xf32>
    %cst_25 = arith.constant dense<0.000000e+00> : vector<2xf32>
    %44 = vector.multi_reduction <add>, %43, %cst_25 [0] : vector<32x2xf32> to vector<2xf32>
    %45 = vector.shape_cast %44 : vector<2xf32> to vector<1x2xf32>
    %cst_26 = arith.constant 0.000000e+00 : f32
    %46 = vector.broadcast %cst_26 : f32 to vector<1x2xf32>
    %47 = arith.maximumf %45, %46 : vector<1x2xf32>
    %c0_27 = arith.constant 0 : index
    %c0_28 = arith.constant 0 : index
    %48 = vector.load %arg8[%c0_27, %c0_28] : memref<32x2xf32, #tpu.memory_space<vmem>>, vector<32x2xf32>
    %49 = vector.broadcast %47 : vector<1x2xf32> to vector<32x2xf32>
    %50 = arith.mulf %48, %49 : vector<32x2xf32>
    %cst_29 = arith.constant dense<0.000000e+00> : vector<32xf32>
    %51 = vector.multi_reduction <add>, %50, %cst_29 [1] : vector<32x2xf32> to vector<32xf32>
    %52 = vector.shape_cast %51 : vector<32xf32> to vector<32x1xf32>
    %53 = arith.negf %52 : vector<32x1xf32>
    %54 = math.exp %53 : vector<32x1xf32>
    %cst_30 = arith.constant 1.000000e+00 : f32
    %55 = vector.broadcast %cst_30 : f32 to vector<32x1xf32>
    %56 = arith.addf %55, %54 : vector<32x1xf32>
    %57 = arith.divf %55, %56 : vector<32x1xf32>
    %58 = vector.broadcast %57 : vector<32x1xf32> to vector<32x384xf32>
    %59 = arith.mulf %36, %58 : vector<32x384xf32>
    %60 = arith.addf %59, %1 : vector<32x384xf32>
    %cst_31 = arith.constant 0.000000e+00 : f32
    %61 = vector.broadcast %cst_31 : f32 to vector<32x384xf32>
    %62 = arith.maximumf %60, %61 : vector<32x384xf32>
    %c0_32 = arith.constant 0 : index
    %c0_33 = arith.constant 0 : index
    %c0_34 = arith.constant 0 : index
    %63 = vector.load %arg9[%c0_32, %c0_33, %c0_34] : memref<1x32x384xf32, #tpu.memory_space<vmem>>, vector<1x32x384xf32>
    %64 = vector.shape_cast %63 : vector<1x32x384xf32> to vector<32x384xf32>
    %65 = vector.shape_cast %62 : vector<32x384xf32> to vector<1x32x384xf32>
    tpu.vector_store %arg9[%c0_32, %c0_33, %c0_34], %65 {strides = array<i32>} : memref<1x32x384xf32, #tpu.memory_space<vmem>>, vector<1x32x384xf32>,
    return
  }
  func.func @transform_0(%arg0: i32) -> (i32, i32, i32) {
    %c0_i32 = arith.constant 0 : i32
    %c0_i32_0 = arith.constant 0 : i32
    %c0_i32_1 = arith.constant 0 : i32
    return %arg0, %c0_i32, %c0_i32_0 : i32, i32, i32
  }
  func.func @transform_1(%arg0: i32) -> (i32, i32) {
    %c0_i32 = arith.constant 0 : i32
    %c0_i32_0 = arith.constant 0 : i32
    %c0_i32_1 = arith.constant 0 : i32
    return %c0_i32, %c0_i32_0 : i32, i32
  }
  func.func @transform_2(%arg0: i32) -> (i32, i32) {
    %c0_i32 = arith.constant 0 : i32
    %c0_i32_0 = arith.constant 0 : i32
    %c0_i32_1 = arith.constant 0 : i32
    return %c0_i32, %c0_i32_0 : i32, i32
  }
  func.func @transform_3(%arg0: i32) -> (i32, i32) {
    %c0_i32 = arith.constant 0 : i32
    %c0_i32_0 = arith.constant 0 : i32
    %c0_i32_1 = arith.constant 0 : i32
    return %c0_i32, %c0_i32_0 : i32, i32
  }
  func.func @transform_4(%arg0: i32) -> (i32, i32) {
    %c0_i32 = arith.constant 0 : i32
    %c0_i32_0 = arith.constant 0 : i32
    %c0_i32_1 = arith.constant 0 : i32
    return %c0_i32, %c0_i32_0 : i32, i32
  }
  func.func @transform_5(%arg0: i32) -> (i32, i32) {
    %c0_i32 = arith.constant 0 : i32
    %c0_i32_0 = arith.constant 0 : i32
    %c0_i32_1 = arith.constant 0 : i32
    return %c0_i32, %c0_i32_0 : i32, i32
  }
  func.func @transform_6(%arg0: i32) -> (i32, i32) {
    %c0_i32 = arith.constant 0 : i32
    %c0_i32_0 = arith.constant 0 : i32
    %c0_i32_1 = arith.constant 0 : i32
    return %c0_i32, %c0_i32_0 : i32, i32
  }
  func.func @transform_7(%arg0: i32) -> (i32, i32) {
    %c0_i32 = arith.constant 0 : i32
    %c0_i32_0 = arith.constant 0 : i32
    %c0_i32_1 = arith.constant 0 : i32
    return %c0_i32, %c0_i32_0 : i32, i32
  }
  func.func @transform_8(%arg0: i32) -> (i32, i32, i32) {
    %c0_i32 = arith.constant 0 : i32
    %c0_i32_0 = arith.constant 0 : i32
    %c0_i32_1 = arith.constant 0 : i32
    return %arg0, %c0_i32, %c0_i32_0 : i32, i32, i32
  }
}

</mosaic_0001>

<llo_original>
// kernel: tpu_custom_call.1
$region0: #{tpu_custom_call.1}
  #allocation0 [shape = 'u32[]', space=smem, size = 0x4, offset = 0x4, fixed_abs, tag = 'smem constant byte address 0x4 - core index']
  #allocation1 [shape = 'u32[72,128]{1,0:T(1,128)}', space=vmem, size = 0x9000, scoped, tag = 'internal scratch']
  %s0 = inlined_call_operand.hbm [shape: f32[2,32,384], index: 0, kind: input, shape index: {}]
  %s1 = inlined_call_operand.vmem [shape: f32[1,384], index: 1, kind: input, shape index: {}]
  %s2 = inlined_call_operand.vmem [shape: bf16[32,288], index: 2, kind: input, shape index: {}]
  %s3 = inlined_call_operand.vmem [shape: f32[32,1], index: 3, kind: input, shape index: {}]
  %s4 = inlined_call_operand.vmem [shape: bf16[32,288], index: 4, kind: input, shape index: {}]
  %s5 = inlined_call_operand.vmem [shape: f32[32,1], index: 5, kind: input, shape index: {}]
  %s6 = inlined_call_operand.vmem [shape: f32[32,2], index: 6, kind: input, shape index: {}]
  %s7 = inlined_call_operand.vmem [shape: f32[32,2], index: 7, kind: input, shape index: {}]
  %s8 = inlined_call_operand.hbm [shape: f32[2,32,384], index: 8, kind: output, shape index: {}]
  %s9 = sld [smem:[#allocation0]]
  $region69: #{tpu_custom_call.1} parent=0
    _
  %s11 = ssub.s32 1, %s9
  %s12 = scalar_select 0, %s11, %s9
  $region1: #{tpu_custom_call.1} parent=0
    #allocation2 [shape = 'u8[98304]{0}', space=vmem, size = 0x18000, scoped, tag = 'input window, operand 0']
    #allocation3 [shape = 's32[2]{0}', space=sflag, size = 0x8, scoped, tag = 'scoped memory for tpu_custom_call.1']
    #allocation4 [shape = 's32[2]{0}', space=sflag, size = 0x8, scoped, tag = 'scoped memory for tpu_custom_call.1']
    #allocation5 [shape = 'u8[98304]{0}', space=vmem, size = 0x18000, scoped, tag = 'output window, operand 0']
    %13 = vsyncpa [#allocation3], 0
    %s14 = scalar_lea.sflag [#allocation3], 1
    %15 = vsyncpa %s14, 0
    %16 = vsyncpa [#allocation4], 0
    %s17 = scalar_lea.sflag [#allocation4], 1
    %18 = vsyncpa %s17, 0
    loop: start=0, step=1, limit=4
    $region2: #{tpu_custom_call.1} parent=1 // loop_pre_header
      _
    $region3: #{tpu_custom_call.1} parent=1 // loop_header
      %s20 = sphi 0, %s24
      %p21 = scmp.ge.s32.totalorder %s20, 4
      %s30 = sphi 0, %s32
      %s33 = sphi 0, %s30
      %s34 = sphi 0, %s33
      %s50 = sphi 0, %s34
      %s54 = sphi 0, %s54
      %s56 = sphi 0, %s54
      %s57 = sphi 0, %s56
      %s71 = sphi 0, %s57
      %s75 = sphi 0, %s75
      %s77 = sphi 0, %s75
      %s78 = sphi 0, %s77
      %s92 = sphi 0, %s78
      %s96 = sphi 0, %s96
      %s98 = sphi 0, %s96
      %s99 = sphi 0, %s98
      %s113 = sphi 0, %s99
      %s117 = sphi 0, %s117
      %s119 = sphi 0, %s117
      %s120 = sphi 0, %s119
      %s134 = sphi 0, %s120
      %s138 = sphi 0, %s138
      %s140 = sphi 0, %s138
      %s141 = sphi 0, %s140
      %s155 = sphi 0, %s141
      %s159 = sphi 0, %s159
      %s161 = sphi 0, %s159
      %s162 = sphi 0, %s161
      %s176 = sphi 0, %s162
      %s180 = sphi 0, %s180
      %s182 = sphi 0, %s180
      %s183 = sphi 0, %s182
      %s197 = sphi 0, %s183
      %s203 = sphi 0, %s205
      %s206 = sphi 0, %s203
      %s207 = sphi 0, %s206
      %s223 = sphi 0, %s207
    $region4: #{tpu_custom_call.1} parent=1 // loop_header_branch
      %23 = sbr.rel (%p21) target = $region8
    $region5: #{tpu_custom_call.1} parent=1 // loop_body
      %s25 = ssub.s32 %s20, 1
      %s26 = ssub.s32 %s20, 2
      %s27 = sadd.s32 %s20, 1
      %s28 = ssub.s32 %s20, %s27
      %p29 = scmp.eq.s32.totalorder %s28, 0
      %s31 = sadd.s32 %s30, 1
      %s32 = scalar_select %p29, %s30, %s31
      %p35 = pneg %p29
      %p36 = scmp.eq.s32.totalorder %s20, 1
      %p37 = por %p35, %p36
      %p38 = scmp.ne.s32.totalorder %s30, %s33
      %p39 = scmp.eq.s32.totalorder %s20, 0
      %p40 = por %p38, %p39
      %p41 = scmp.ne.s32.totalorder %s30, %s33
      %p42 = scmp.eq.s32.totalorder %s25, 1
      %p43 = por %p41, %p42
      %p44 = scmp.ne.s32.totalorder %s33, %s34
      %p45 = scmp.eq.s32.totalorder %s25, 0
      %p46 = por %p44, %p45
      %p47 = scmp.ne.s32.totalorder %s33, %s34
      %p48 = scmp.eq.s32.totalorder %s26, 1
      %p49 = por %p47, %p48
      %p51 = scmp.ne.s32.totalorder %s34, %s50
      %p52 = scmp.eq.s32.totalorder %s26, 0
      %p53 = por %p51, %p52
      %s55 = sadd.s32 %s54, 1
      %p58 = scmp.eq.s32.totalorder %s20, 1
      %p59 = scmp.ne.s32.totalorder %s54, %s56
      %p60 = scmp.eq.s32.totalorder %s20, 0
      %p61 = por %p59, %p60
      %p62 = scmp.ne.s32.totalorder %s54, %s56
      %p63 = scmp.eq.s32.totalorder %s25, 1
      %p64 = por %p62, %p63
      %p65 = scmp.ne.s32.totalorder %s56, %s57
      %p66 = scmp.eq.s32.totalorder %s25, 0
      %p67 = por %p65, %p66
      %p68 = scmp.ne.s32.totalorder %s56, %s57
      %p69 = scmp.eq.s32.totalorder %s26, 1
      %p70 = por %p68, %p69
      %p72 = scmp.ne.s32.totalorder %s57, %s71
      %p73 = scmp.eq.s32.totalorder %s26, 0
      %p74 = por %p72, %p73
      %s76 = sadd.s32 %s75, 1
      %p79 = scmp.eq.s32.totalorder %s20, 1
      %p80 = scmp.ne.s32.totalorder %s75, %s77
      %p81 = scmp.eq.s32.totalorder %s20, 0
      %p82 = por %p80, %p81
      %p83 = scmp.ne.s32.totalorder %s75, %s77
      %p84 = scmp.eq.s32.totalorder %s25, 1
      %p85 = por %p83, %p84
      %p86 = scmp.ne.s32.totalorder %s77, %s78
      %p87 = scmp.eq.s32.totalorder %s25, 0
      %p88 = por %p86, %p87
      %p89 = scmp.ne.s32.totalorder %s77, %s78
      %p90 = scmp.eq.s32.totalorder %s26, 1
      %p91 = por %p89, %p90
      %p93 = scmp.ne.s32.totalorder %s78, %s92
      %p94 = scmp.eq.s32.totalorder %s26, 0
      %p95 = por %p93, %p94
      %s97 = sadd.s32 %s96, 1
      %p100 = scmp.eq.s32.totalorder %s20, 1
      %p101 = scmp.ne.s32.totalorder %s96, %s98
      %p102 = scmp.eq.s32.totalorder %s20, 0
      %p103 = por %p101, %p102
      %p104 = scmp.ne.s32.totalorder %s96, %s98
      %p105 = scmp.eq.s32.totalorder %s25, 1
      %p106 = por %p104, %p105
      %p107 = scmp.ne.s32.totalorder %s98, %s99
      %p108 = scmp.eq.s32.totalorder %s25, 0
      %p109 = por %p107, %p108
      %p110 = scmp.ne.s32.totalorder %s98, %s99
      %p111 = scmp.eq.s32.totalorder %s26, 1
      %p112 = por %p110, %p111
      %p114 = scmp.ne.s32.totalorder %s99, %s113
      %p115 = scmp.eq.s32.totalorder %s26, 0
      %p116 = por %p114, %p115
      %s118 = sadd.s32 %s117, 1
      %p121 = scmp.eq.s32.totalorder %s20, 1
      %p122 = scmp.ne.s32.totalorder %s117, %s119
      %p123 = scmp.eq.s32.totalorder %s20, 0
      %p124 = por %p122, %p123
      %p125 = scmp.ne.s32.totalorder %s117, %s119
      %p126 = scmp.eq.s32.totalorder %s25, 1
      %p127 = por %p125, %p126
      %p128 = scmp.ne.s32.totalorder %s119, %s120
      %p129 = scmp.eq.s32.totalorder %s25, 0
      %p130 = por %p128, %p129
      %p131 = scmp.ne.s32.totalorder %s119, %s120
      %p132 = scmp.eq.s32.totalorder %s26, 1
      %p133 = por %p131, %p132
      %p135 = scmp.ne.s32.totalorder %s120, %s134
      %p136 = scmp.eq.s32.totalorder %s26, 0
      %p137 = por %p135, %p136
      %s139 = sadd.s32 %s138, 1
      %p142 = scmp.eq.s32.totalorder %s20, 1
      %p143 = scmp.ne.s32.totalorder %s138, %s140
      %p144 = scmp.eq.s32.totalorder %s20, 0
      %p145 = por %p143, %p144
      %p146 = scmp.ne.s32.totalorder %s138, %s140
      %p147 = scmp.eq.s32.totalorder %s25, 1
      %p148 = por %p146, %p147
      %p149 = scmp.ne.s32.totalorder %s140, %s141
      %p150 = scmp.eq.s32.totalorder %s25, 0
      %p151 = por %p149, %p150
      %p152 = scmp.ne.s32.totalorder %s140, %s141
      %p153 = scmp.eq.s32.totalorder %s26, 1
      %p154 = por %p152, %p153
      %p156 = scmp.ne.s32.totalorder %s141, %s155
      %p157 = scmp.eq.s32.totalorder %s26, 0
      %p158 = por %p156, %p157
      %s160 = sadd.s32 %s159, 1
      %p163 = scmp.eq.s32.totalorder %s20, 1
      %p164 = scmp.ne.s32.totalorder %s159, %s161
      %p165 = scmp.eq.s32.totalorder %s20, 0
      %p166 = por %p164, %p165
      %p167 = scmp.ne.s32.totalorder %s159, %s161
      %p168 = scmp.eq.s32.totalorder %s25, 1
      %p169 = por %p167, %p168
      %p170 = scmp.ne.s32.totalorder %s161, %s162
      %p171 = scmp.eq.s32.totalorder %s25, 0
      %p172 = por %p170, %p171
      %p173 = scmp.ne.s32.totalorder %s161, %s162
      %p174 = scmp.eq.s32.totalorder %s26, 1
      %p175 = por %p173, %p174
      %p177 = scmp.ne.s32.totalorder %s162, %s176
      %p178 = scmp.eq.s32.totalorder %s26, 0
      %p179 = por %p177, %p178
      %s181 = sadd.s32 %s180, 1
      %p184 = scmp.eq.s32.totalorder %s20, 1
      %p185 = scmp.ne.s32.totalorder %s180, %s182
      %p186 = scmp.eq.s32.totalorder %s20, 0
      %p187 = por %p185, %p186
      %p188 = scmp.ne.s32.totalorder %s180, %s182
      %p189 = scmp.eq.s32.totalorder %s25, 1
      %p190 = por %p188, %p189
      %p191 = scmp.ne.s32.totalorder %s182, %s183
      %p192 = scmp.eq.s32.totalorder %s25, 0
      %p193 = por %p191, %p192
      %p194 = scmp.ne.s32.totalorder %s182, %s183
      %p195 = scmp.eq.s32.totalorder %s26, 1
      %p196 = por %p194, %p195
      %p198 = scmp.ne.s32.totalorder %s183, %s197
      %p199 = scmp.eq.s32.totalorder %s26, 0
      %p200 = por %p198, %p199
      %s201 = ssub.s32 %s20, %s27
      %p202 = scmp.eq.s32.totalorder %s201, 0
      %s204 = sadd.s32 %s203, 1
      %s205 = scalar_select %p202, %s203, %s204
      %p208 = pneg %p202
      %p209 = scmp.eq.s32.totalorder %s20, 1
      %p210 = por %p208, %p209
      %p211 = scmp.ne.s32.totalorder %s203, %s206
      %p212 = scmp.eq.s32.totalorder %s20, 0
      %p213 = por %p211, %p212
      %p214 = scmp.ne.s32.totalorder %s203, %s206
      %p215 = scmp.eq.s32.totalorder %s25, 1
      %p216 = por %p214, %p215
      %p217 = scmp.ne.s32.totalorder %s206, %s207
      %p218 = scmp.eq.s32.totalorder %s25, 0
      %p219 = por %p217, %p218
      %p220 = scmp.ne.s32.totalorder %s206, %s207
      %p221 = scmp.eq.s32.totalorder %s26, 1
      %p222 = por %p220, %p221
      %p224 = scmp.ne.s32.totalorder %s207, %s223
      %p225 = scmp.eq.s32.totalorder %s26, 0
      %p226 = por %p224, %p225
      %p227 = scmp.le.s32.totalorder 1, %s20
      %p228 = scmp.lt.s32.totalorder %s20, 3
      %p229 = pnand %p227, %p228
      %p230 = pneg %p229
      // Predicated region
      $region9: #{tpu_custom_call.1} parent=5 // pred_check
        _
      $region10: #{tpu_custom_call.1} parent=5 // pred_check_branch
        %232 = sbr.rel (%p229) target = $region12
      $region11: #{tpu_custom_call.1} parent=5 // pred_region
        %s233 = ssub.s32 %s20, 1
        // Predicated region
        $region13: #{tpu_custom_call.1} parent=11 // pred_check
          %p234 = pneg %p67
        $region14: #{tpu_custom_call.1} parent=11 // pred_check_branch
          %236 = sbr.rel (%p234) target = $region16
        $region15: #{tpu_custom_call.1} parent=11 // pred_region
          _
        $region16: #{tpu_custom_call.1} parent=11 // pred_fallthru
          _
        // Predicated region
        $region17: #{tpu_custom_call.1} parent=11 // pred_check
          %p237 = pneg %p88
        $region18: #{tpu_custom_call.1} parent=11 // pred_check_branch
          %239 = sbr.rel (%p237) target = $region20
        $region19: #{tpu_custom_call.1} parent=11 // pred_region
          _
        $region20: #{tpu_custom_call.1} parent=11 // pred_fallthru
          _
        // Predicated region
        $region21: #{tpu_custom_call.1} parent=11 // pred_check
          %p240 = pneg %p109
        $region22: #{tpu_custom_call.1} parent=11 // pred_check_branch
          %242 = sbr.rel (%p240) target = $region24
        $region23: #{tpu_custom_call.1} parent=11 // pred_region
          _
        $region24: #{tpu_custom_call.1} parent=11 // pred_fallthru
          _
        // Predicated region
        $region25: #{tpu_custom_call.1} parent=11 // pred_check
          %p243 = pneg %p130
        $region26: #{tpu_custom_call.1} parent=11 // pred_check_branch
          %245 = sbr.rel (%p243) target = $region28
        $region27: #{tpu_custom_call.1} parent=11 // pred_region
          _
        $region28: #{tpu_custom_call.1} parent=11 // pred_fallthru
          _
        // Predicated region
        $region29: #{tpu_custom_call.1} parent=11 // pred_check
          %p246 = pneg %p151
        $region30: #{tpu_custom_call.1} parent=11 // pred_check_branch
          %248 = sbr.rel (%p246) target = $region32
        $region31: #{tpu_custom_call.1} parent=11 // pred_region
          _
        $region32: #{tpu_custom_call.1} parent=11 // pred_fallthru
          _
        // Predicated region
        $region33: #{tpu_custom_call.1} parent=11 // pred_check
          %p249 = pneg %p172
        $region34: #{tpu_custom_call.1} parent=11 // pred_check_branch
          %251 = sbr.rel (%p249) target = $region36
        $region35: #{tpu_custom_call.1} parent=11 // pred_region
          _
        $region36: #{tpu_custom_call.1} parent=11 // pred_fallthru
          _
        // Predicated region
        $region37: #{tpu_custom_call.1} parent=11 // pred_check
          %p252 = pneg %p193
        $region38: #{tpu_custom_call.1} parent=11 // pred_check_branch
          %254 = sbr.rel (%p252) target = $region40
        $region39: #{tpu_custom_call.1} parent=11 // pred_region
          _
        $region40: #{tpu_custom_call.1} parent=11 // pred_fallthru
          _
      $region12: #{tpu_custom_call.1} parent=5 // pred_fallthru
        _
      %p255 = scmp.lt.s32.totalorder %s20, 2
      // Predicated region
      $region41: #{tpu_custom_call.1} parent=5 // pred_check
        %p256 = pneg %p255
      $region42: #{tpu_custom_call.1} parent=5 // pred_check_branch
        %258 = sbr.rel (%p256) target = $region44
      $region43: #{tpu_custom_call.1} parent=5 // pred_region
        // Predicated region
        $region45: #{tpu_custom_call.1} parent=43 // pred_check
          %p259 = pneg %p40
        $region46: #{tpu_custom_call.1} parent=43 // pred_check_branch
          %261 = sbr.rel (%p259) target = $region48
        $region47: #{tpu_custom_call.1} parent=43 // pred_region
          %s262 = sand.u32 %s30, 1
          %s263 = scalar_lea.sflag [#allocation3], %s262
          %s264 = sand.u32 %s30, 1
          %s265 = smul.addr %s264, 96
          %s266 = scalar_lea.vmem [#allocation2], %s265
          %268 = vsyncadd %s263, 0
          %s269 = smul.addr %s20, 12
          %s270 = smul.addr %s269, 8
          %s271 = scalar_lea.hbm %s0, %s270
          %s272 = sshll.u32 %s271, 4
          %s273 = int_to_ptr.hbm [resolvable:$true] %s272
          %s274 = sshll.u32 %s266, 4
          %s275 = int_to_ptr.vmem [resolvable:$true] %s274
          %280 = dma.hbm_to_vmem [thread:$0]  %s273, 1536, %s275, %s263, 384, 384, 24
        $region48: #{tpu_custom_call.1} parent=43 // pred_fallthru
          _
      $region44: #{tpu_custom_call.1} parent=5 // pred_fallthru
        _
      %p281 = scmp.le.s32.totalorder 1, %s20
      %p282 = scmp.lt.s32.totalorder %s20, 3
      %p283 = pnand %p281, %p282
      %p284 = pneg %p283
      // Predicated region
      $region49: #{tpu_custom_call.1} parent=5 // pred_check
        _
      $region50: #{tpu_custom_call.1} parent=5 // pred_check_branch
        %286 = sbr.rel (%p283) target = $region52
      $region51: #{tpu_custom_call.1} parent=5 // pred_region
        %s287 = ssub.s32 %s20, 1
        %s288 = sand.u32 %s33, 1
        %s289 = scalar_lea.sflag [#allocation3], %s288
        %s290 = sand.u32 %s33, 1
        %s291 = smul.addr %s290, 96
        %s292 = scalar_lea.vmem [#allocation2], %s291
        // Predicated region
        $region53: #{tpu_custom_call.1} parent=51 // pred_check
          %p293 = pneg %p46
        $region54: #{tpu_custom_call.1} parent=51 // pred_check_branch
          %295 = sbr.rel (%p293) target = $region56
        $region55: #{tpu_custom_call.1} parent=51 // pred_region
          %297 = dma.done %s289, 1536
        $region56: #{tpu_custom_call.1} parent=51 // pred_fallthru
          _
        %s298 = sand.u32 %s33, 1
        %s299 = scalar_lea.sflag [#allocation3], %s298
        %s300 = sand.u32 %s33, 1
        %s301 = smul.addr %s300, 96
        %s302 = scalar_lea.vmem [#allocation2], %s301
        %p303 = pneg %p46
        %p304 = pneg %p43
        %p305 = pneg %p67
        %p306 = pneg %p64
        %p307 = pneg %p88
        %p308 = pneg %p85
        %p309 = pneg %p109
        %p310 = pneg %p106
        %p311 = pneg %p130
        %p312 = pneg %p127
        %p313 = pneg %p151
        %p314 = pneg %p148
        %p315 = pneg %p172
        %p316 = pneg %p169
        %p317 = pneg %p193
        %p318 = pneg %p190
        %p319 = pneg %p219
        %p320 = pneg %p216
        %s321 = sand.u32 %s206, 1
        %s322 = scalar_lea.sflag [#allocation4], %s321
        %s323 = sand.u32 %s206, 1
        %s324 = smul.addr %s323, 96
        %s325 = scalar_lea.vmem [#allocation5], %s324
        %v327 = vld [vmem:[%s292] sm:$0xff]
        %v328 = vld [vmem:[%s292 + $0x8] sm:$0xff]
        %v329 = vld [vmem:[%s292 + $0x10] sm:$0xff]
        %v330 = vld [vmem:[%s292 + $0x18] sm:$0xff]
        %v331 = vld [vmem:[%s292 + $0x20] sm:$0xff]
        %v332 = vld [vmem:[%s292 + $0x28] sm:$0xff]
        %v333 = vld [vmem:[%s292 + $0x30] sm:$0xff]
        %v334 = vld [vmem:[%s292 + $0x38] sm:$0xff]
        %v335 = vld [vmem:[%s292 + $0x40] sm:$0xff]
        %v336 = vld [vmem:[%s292 + $0x48] sm:$0xff]
        %v337 = vld [vmem:[%s292 + $0x50] sm:$0xff]
        %v338 = vld [vmem:[%s292 + $0x58] sm:$0xff]
        %v339 = vld [vmem:[%s1] sm:$0x7]
        %340 = vrot.lane.b32.xlu0 %v327, 19
        %v341 = vpop.permute.xlu0 %340
        %342 = vrot.lane.b32.xlu0 %v330, 19
        %v343 = vpop.permute.xlu0 %342
        %344 = vrot.lane.b32.xlu0 %v333, 19
        %v345 = vpop.permute.xlu0 %344
        %346 = vrot.lane.b32.xlu0 %v336, 19
        %v347 = vpop.permute.xlu0 %346
        %348 = vrot.lane.b32.xlu0 %v328, 19
        %v349 = vpop.permute.xlu0 %348
        %350 = vrot.lane.b32.xlu0 %v331, 19
        %v351 = vpop.permute.xlu0 %350
        %352 = vrot.lane.b32.xlu0 %v334, 19
        %v353 = vpop.permute.xlu0 %352
        %354 = vrot.lane.b32.xlu0 %v337, 19
        %v355 = vpop.permute.xlu0 %354
        %356 = vrot.lane.b32.xlu0 %v329, 19
        %v357 = vpop.permute.xlu0 %356
        %358 = vrot.lane.b32.xlu0 %v332, 19
        %v359 = vpop.permute.xlu0 %358
        %360 = vrot.lane.b32.xlu0 %v335, 19
        %v361 = vpop.permute.xlu0 %360
        %362 = vrot.lane.b32.xlu0 %v338, 19
        %v363 = vpop.permute.xlu0 %362
        %v364 = vlaneseq
        %v365 = vand.u32 %v364, 127
        %vm366 = vcmp.lt.s32.totalorder %v365, 19
        %v367 = vsel %vm366, %v349, %v357
        %v368 = vsel %vm366, %v351, %v359
        %v369 = vsel %vm366, %v353, %v361
        %v370 = vsel %vm366, %v355, %v363
        %v371 = vsel %vm366, %v341, %v349
        %v372 = vsel %vm366, %v343, %v351
        %v373 = vsel %vm366, %v345, %v353
        %v374 = vsel %vm366, %v347, %v355
        %v375 = vsel %vm366, %v357, %v341
        %v376 = vsel %vm366, %v359, %v343
        %v377 = vsel %vm366, %v361, %v345
        %v378 = vsel %vm366, %v363, %v347
        %379 = vrot.lane.b32.xlu0 %v327, 18
        %v380 = vpop.permute.xlu0 %379
        %381 = vrot.lane.b32.xlu0 %v330, 18
        %v382 = vpop.permute.xlu0 %381
        %383 = vrot.lane.b32.xlu0 %v333, 18
        %v384 = vpop.permute.xlu0 %383
        %385 = vrot.lane.b32.xlu0 %v336, 18
        %v386 = vpop.permute.xlu0 %385
        %387 = vrot.lane.b32.xlu0 %v328, 18
        %v388 = vpop.permute.xlu0 %387
        %389 = vrot.lane.b32.xlu0 %v331, 18
        %v390 = vpop.permute.xlu0 %389
        %391 = vrot.lane.b32.xlu0 %v334, 18
        %v392 = vpop.permute.xlu0 %391
        %393 = vrot.lane.b32.xlu0 %v337, 18
        %v394 = vpop.permute.xlu0 %393
        %395 = vrot.lane.b32.xlu0 %v329, 18
        %v396 = vpop.permute.xlu0 %395
        %397 = vrot.lane.b32.xlu0 %v332, 18
        %v398 = vpop.permute.xlu0 %397
        %399 = vrot.lane.b32.xlu0 %v335, 18
        %v400 = vpop.permute.xlu0 %399
        %401 = vrot.lane.b32.xlu0 %v338, 18
        %v402 = vpop.permute.xlu0 %401
        %vm403 = vcmp.lt.s32.totalorder %v365, 18
        %v404 = vsel %vm403, %v388, %v396
        %v405 = vsel %vm403, %v390, %v398
        %v406 = vsel %vm403, %v392, %v400
        %v407 = vsel %vm403, %v394, %v402
        %v408 = vsel %vm403, %v380, %v388
        %v409 = vsel %vm403, %v382, %v390
        %v410 = vsel %vm403, %v384, %v392
        %v411 = vsel %vm403, %v386, %v394
        %v412 = vsel %vm403, %v396, %v380
        %v413 = vsel %vm403, %v398, %v382
        %v414 = vsel %vm403, %v400, %v384
        %v415 = vsel %vm403, %v402, %v386
        %416 = vrot.lane.b32.xlu0 %v327, 17
        %v417 = vpop.permute.xlu0 %416
        %418 = vrot.lane.b32.xlu0 %v330, 17
        %v419 = vpop.permute.xlu0 %418
        %420 = vrot.lane.b32.xlu0 %v333, 17
        %v421 = vpop.permute.xlu0 %420
        %422 = vrot.lane.b32.xlu0 %v336, 17
        %v423 = vpop.permute.xlu0 %422
        %424 = vrot.lane.b32.xlu0 %v328, 17
        %v425 = vpop.permute.xlu0 %424
        %426 = vrot.lane.b32.xlu0 %v331, 17
        %v427 = vpop.permute.xlu0 %426
        %428 = vrot.lane.b32.xlu0 %v334, 17
        %v429 = vpop.permute.xlu0 %428
        %430 = vrot.lane.b32.xlu0 %v337, 17
        %v431 = vpop.permute.xlu0 %430
        %432 = vrot.lane.b32.xlu0 %v329, 17
        %v433 = vpop.permute.xlu0 %432
        %434 = vrot.lane.b32.xlu0 %v332, 17
        %v435 = vpop.permute.xlu0 %434
        %436 = vrot.lane.b32.xlu0 %v335, 17
        %v437 = vpop.permute.xlu0 %436
        %438 = vrot.lane.b32.xlu0 %v338, 17
        %v439 = vpop.permute.xlu0 %438
        %vm440 = vcmp.lt.s32.totalorder %v365, 17
        %v441 = vsel %vm440, %v425, %v433
        %v442 = vsel %vm440, %v427, %v435
        %v443 = vsel %vm440, %v429, %v437
        %v444 = vsel %vm440, %v431, %v439
        %v445 = vsel %vm440, %v417, %v425
        %v446 = vsel %vm440, %v419, %v427
        %v447 = vsel %vm440, %v421, %v429
        %v448 = vsel %vm440, %v423, %v431
        %v449 = vsel %vm440, %v433, %v417
        %v450 = vsel %vm440, %v435, %v419
        %v451 = vsel %vm440, %v437, %v421
        %v452 = vsel %vm440, %v439, %v423
        %453 = vrot.lane.b32.xlu0 %v327, 1
        %v454 = vpop.permute.xlu0 %453
        %455 = vrot.lane.b32.xlu0 %v330, 1
        %v456 = vpop.permute.xlu0 %455
        %457 = vrot.lane.b32.xlu0 %v333, 1
        %v458 = vpop.permute.xlu0 %457
        %459 = vrot.lane.b32.xlu0 %v336, 1
        %v460 = vpop.permute.xlu0 %459
        %461 = vrot.lane.b32.xlu0 %v328, 1
        %v462 = vpop.permute.xlu0 %461
        %463 = vrot.lane.b32.xlu0 %v331, 1
        %v464 = vpop.permute.xlu0 %463
        %465 = vrot.lane.b32.xlu0 %v334, 1
        %v466 = vpop.permute.xlu0 %465
        %467 = vrot.lane.b32.xlu0 %v337, 1
        %v468 = vpop.permute.xlu0 %467
        %469 = vrot.lane.b32.xlu0 %v329, 1
        %v470 = vpop.permute.xlu0 %469
        %471 = vrot.lane.b32.xlu0 %v332, 1
        %v472 = vpop.permute.xlu0 %471
        %473 = vrot.lane.b32.xlu0 %v335, 1
        %v474 = vpop.permute.xlu0 %473
        %475 = vrot.lane.b32.xlu0 %v338, 1
        %v476 = vpop.permute.xlu0 %475
        %vm477 = vcmp.lt.s32.totalorder %v365, 1
        %v478 = vsel %vm477, %v462, %v470
        %v479 = vsel %vm477, %v464, %v472
        %v480 = vsel %vm477, %v466, %v474
        %v481 = vsel %vm477, %v468, %v476
        %v482 = vsel %vm477, %v454, %v462
        %v483 = vsel %vm477, %v456, %v464
        %v484 = vsel %vm477, %v458, %v466
        %v485 = vsel %vm477, %v460, %v468
        %v486 = vsel %vm477, %v470, %v454
        %v487 = vsel %vm477, %v472, %v456
        %v488 = vsel %vm477, %v474, %v458
        %v489 = vsel %vm477, %v476, %v460
        %490 = vrot.lane.b32.xlu0 %v327, 127
        %v491 = vpop.permute.xlu0 %490
        %492 = vrot.lane.b32.xlu0 %v330, 127
        %v493 = vpop.permute.xlu0 %492
        %494 = vrot.lane.b32.xlu0 %v333, 127
        %v495 = vpop.permute.xlu0 %494
        %496 = vrot.lane.b32.xlu0 %v336, 127
        %v497 = vpop.permute.xlu0 %496
        %498 = vrot.lane.b32.xlu0 %v328, 127
        %v499 = vpop.permute.xlu0 %498
        %500 = vrot.lane.b32.xlu0 %v331, 127
        %v501 = vpop.permute.xlu0 %500
        %502 = vrot.lane.b32.xlu0 %v334, 127
        %v503 = vpop.permute.xlu0 %502
        %504 = vrot.lane.b32.xlu0 %v337, 127
        %v505 = vpop.permute.xlu0 %504
        %506 = vrot.lane.b32.xlu0 %v329, 127
        %v507 = vpop.permute.xlu0 %506
        %508 = vrot.lane.b32.xlu0 %v332, 127
        %v509 = vpop.permute.xlu0 %508
        %510 = vrot.lane.b32.xlu0 %v335, 127
        %v511 = vpop.permute.xlu0 %510
        %512 = vrot.lane.b32.xlu0 %v338, 127
        %v513 = vpop.permute.xlu0 %512
        %vm514 = vcmp.lt.s32.totalorder %v365, 127
        %v515 = vsel %vm514, %v499, %v507
        %v516 = vsel %vm514, %v501, %v509
        %v517 = vsel %vm514, %v503, %v511
        %v518 = vsel %vm514, %v505, %v513
        %v519 = vsel %vm514, %v491, %v499
        %v520 = vsel %vm514, %v493, %v501
        %v521 = vsel %vm514, %v495, %v503
        %v522 = vsel %vm514, %v497, %v505
        %v523 = vsel %vm514, %v507, %v491
        %v524 = vsel %vm514, %v509, %v493
        %v525 = vsel %vm514, %v511, %v495
        %v526 = vsel %vm514, %v513, %v497
        %527 = vrot.lane.b32.xlu0 %v327, 111
        %v528 = vpop.permute.xlu0 %527
        %529 = vrot.lane.b32.xlu0 %v330, 111
        %v530 = vpop.permute.xlu0 %529
        %531 = vrot.lane.b32.xlu0 %v333, 111
        %v532 = vpop.permute.xlu0 %531
        %533 = vrot.lane.b32.xlu0 %v336, 111
        %v534 = vpop.permute.xlu0 %533
        %535 = vrot.lane.b32.xlu0 %v328, 111
        %v536 = vpop.permute.xlu0 %535
        %537 = vrot.lane.b32.xlu0 %v331, 111
        %v538 = vpop.permute.xlu0 %537
        %539 = vrot.lane.b32.xlu0 %v334, 111
        %v540 = vpop.permute.xlu0 %539
        %541 = vrot.lane.b32.xlu0 %v337, 111
        %v542 = vpop.permute.xlu0 %541
        %543 = vrot.lane.b32.xlu0 %v329, 111
        %v544 = vpop.permute.xlu0 %543
        %545 = vrot.lane.b32.xlu0 %v332, 111
        %v546 = vpop.permute.xlu0 %545
        %547 = vrot.lane.b32.xlu0 %v335, 111
        %v548 = vpop.permute.xlu0 %547
        %549 = vrot.lane.b32.xlu0 %v338, 111
        %v550 = vpop.permute.xlu0 %549
        %vm551 = vcmp.lt.s32.totalorder %v365, 111
        %v552 = vsel %vm551, %v536, %v544
        %v553 = vsel %vm551, %v538, %v546
        %v554 = vsel %vm551, %v540, %v548
        %v555 = vsel %vm551, %v542, %v550
        %v556 = vsel %vm551, %v528, %v536
        %v557 = vsel %vm551, %v530, %v538
        %v558 = vsel %vm551, %v532, %v540
        %v559 = vsel %vm551, %v534, %v542
        %v560 = vsel %vm551, %v544, %v528
        %v561 = vsel %vm551, %v546, %v530
        %v562 = vsel %vm551, %v548, %v532
        %v563 = vsel %vm551, %v550, %v534
        %564 = vrot.lane.b32.xlu0 %v327, 110
        %v565 = vpop.permute.xlu0 %564
        %566 = vrot.lane.b32.xlu0 %v330, 110
        %v567 = vpop.permute.xlu0 %566
        %568 = vrot.lane.b32.xlu0 %v333, 110
        %v569 = vpop.permute.xlu0 %568
        %570 = vrot.lane.b32.xlu0 %v336, 110
        %v571 = vpop.permute.xlu0 %570
        %572 = vrot.lane.b32.xlu0 %v328, 110
        %v573 = vpop.permute.xlu0 %572
        %574 = vrot.lane.b32.xlu0 %v331, 110
        %v575 = vpop.permute.xlu0 %574
        %576 = vrot.lane.b32.xlu0 %v334, 110
        %v577 = vpop.permute.xlu0 %576
        %578 = vrot.lane.b32.xlu0 %v337, 110
        %v579 = vpop.permute.xlu0 %578
        %580 = vrot.lane.b32.xlu0 %v329, 110
        %v581 = vpop.permute.xlu0 %580
        %582 = vrot.lane.b32.xlu0 %v332, 110
        %v583 = vpop.permute.xlu0 %582
        %584 = vrot.lane.b32.xlu0 %v335, 110
        %v585 = vpop.permute.xlu0 %584
        %586 = vrot.lane.b32.xlu0 %v338, 110
        %v587 = vpop.permute.xlu0 %586
        %vm588 = vcmp.lt.s32.totalorder %v365, 110
        %v589 = vsel %vm588, %v573, %v581
        %v590 = vsel %vm588, %v575, %v583
        %v591 = vsel %vm588, %v577, %v585
        %v592 = vsel %vm588, %v579, %v587
        %v593 = vsel %vm588, %v565, %v573
        %v594 = vsel %vm588, %v567, %v575
        %v595 = vsel %vm588, %v569, %v577
        %v596 = vsel %vm588, %v571, %v579
        %v597 = vsel %vm588, %v581, %v565
        %v598 = vsel %vm588, %v583, %v567
        %v599 = vsel %vm588, %v585, %v569
        %v600 = vsel %vm588, %v587, %v571
        %601 = vrot.lane.b32.xlu0 %v327, 109
        %v602 = vpop.permute.xlu0 %601
        %603 = vrot.lane.b32.xlu0 %v330, 109
        %v604 = vpop.permute.xlu0 %603
        %605 = vrot.lane.b32.xlu0 %v333, 109
        %v606 = vpop.permute.xlu0 %605
        %607 = vrot.lane.b32.xlu0 %v336, 109
        %v608 = vpop.permute.xlu0 %607
        %609 = vrot.lane.b32.xlu0 %v328, 109
        %v610 = vpop.permute.xlu0 %609
        %611 = vrot.lane.b32.xlu0 %v331, 109
        %v612 = vpop.permute.xlu0 %611
        %613 = vrot.lane.b32.xlu0 %v334, 109
        %v614 = vpop.permute.xlu0 %613
        %615 = vrot.lane.b32.xlu0 %v337, 109
        %v616 = vpop.permute.xlu0 %615
        %617 = vrot.lane.b32.xlu0 %v329, 109
        %v618 = vpop.permute.xlu0 %617
        %619 = vrot.lane.b32.xlu0 %v332, 109
        %v620 = vpop.permute.xlu0 %619
        %621 = vrot.lane.b32.xlu0 %v335, 109
        %v622 = vpop.permute.xlu0 %621
        %623 = vrot.lane.b32.xlu0 %v338, 109
        %v624 = vpop.permute.xlu0 %623
        %vm625 = vcmp.lt.s32.totalorder %v365, 109
        %v626 = vsel %vm625, %v610, %v618
        %v627 = vsel %vm625, %v612, %v620
        %v628 = vsel %vm625, %v614, %v622
        %v629 = vsel %vm625, %v616, %v624
        %v630 = vsel %vm625, %v602, %v610
        %v631 = vsel %vm625, %v604, %v612
        %v632 = vsel %vm625, %v606, %v614
        %v633 = vsel %vm625, %v608, %v616
        %v634 = vsel %vm625, %v618, %v602
        %v635 = vsel %vm625, %v620, %v604
        %v636 = vsel %vm625, %v622, %v606
        %v637 = vsel %vm625, %v624, %v608
        %v638 = vpack.c.bf16 %v376, %v375
        %v639 = vpack.c.bf16 %v372, %v371
        %v640 = vpack.c.bf16 %v368, %v367
        %v641 = vpack.c.bf16 %v378, %v377
        %v642 = vpack.c.bf16 %v374, %v373
        %v643 = vpack.c.bf16 %v370, %v369
        %v644 = vpack.c.bf16 %v413, %v412
        %v645 = vpack.c.bf16 %v409, %v408
        %v646 = vpack.c.bf16 %v405, %v404
        %v647 = vpack.c.bf16 %v415, %v414
        %v648 = vpack.c.bf16 %v411, %v410
        %v649 = vpack.c.bf16 %v407, %v406
        %v650 = vpack.c.bf16 %v450, %v449
        %v651 = vpack.c.bf16 %v446, %v445
        %v652 = vpack.c.bf16 %v442, %v441
        %v653 = vpack.c.bf16 %v452, %v451
        %v654 = vpack.c.bf16 %v448, %v447
        %v655 = vpack.c.bf16 %v444, %v443
        %v656 = vpack.c.bf16 %v487, %v486
        %v657 = vpack.c.bf16 %v483, %v482
        %v658 = vpack.c.bf16 %v479, %v478
        %v659 = vpack.c.bf16 %v489, %v488
        %v660 = vpack.c.bf16 %v485, %v484
        %v661 = vpack.c.bf16 %v481, %v480
        %v662 = vpack.c.bf16 %v330, %v327
        %v663 = vpack.c.bf16 %v331, %v328
        %v664 = vpack.c.bf16 %v332, %v329
        %v665 = vpack.c.bf16 %v336, %v333
        %v666 = vpack.c.bf16 %v337, %v334
        %v667 = vpack.c.bf16 %v338, %v335
        %v668 = vpack.c.bf16 %v520, %v519
        %v669 = vpack.c.bf16 %v516, %v515
        %v670 = vpack.c.bf16 %v524, %v523
        %v671 = vpack.c.bf16 %v522, %v521
        %v672 = vpack.c.bf16 %v518, %v517
        %v673 = vpack.c.bf16 %v526, %v525
        %v674 = vpack.c.bf16 %v557, %v556
        %v675 = vpack.c.bf16 %v553, %v552
        %v676 = vpack.c.bf16 %v561, %v560
        %v677 = vpack.c.bf16 %v559, %v558
        %v678 = vpack.c.bf16 %v555, %v554
        %v679 = vpack.c.bf16 %v563, %v562
        %v680 = vpack.c.bf16 %v594, %v593
        %v681 = vpack.c.bf16 %v590, %v589
        %v682 = vpack.c.bf16 %v598, %v597
        %v683 = vpack.c.bf16 %v596, %v595
        %v684 = vpack.c.bf16 %v592, %v591
        %v685 = vpack.c.bf16 %v600, %v599
        %v686 = vpack.c.bf16 %v631, %v630
        %v687 = vpack.c.bf16 %v627, %v626
        %v688 = vpack.c.bf16 %v635, %v634
        %v689 = vpack.c.bf16 %v633, %v632
        %v690 = vpack.c.bf16 %v629, %v628
        %v691 = vpack.c.bf16 %v637, %v636
        %v692 = vld [vmem:[%s2] sm:$0xff]
        %v693 = vld [vmem:[%s2 + $0x8] sm:$0xf]
        %v694 = vld [vmem:[%s2 + $0xc] sm:$0xff]
        %v695 = vld [vmem:[%s2 + $0x14] sm:$0xf]
        %v696 = vld [vmem:[%s2 + $0x18] sm:$0xff]
        %v697 = vld [vmem:[%s2 + $0x20] sm:$0xf]
        %v698 = vld [vmem:[%s2 + $0x24] sm:$0xff]
        %v699 = vld [vmem:[%s2 + $0x2c] sm:$0xf]
        %v700 = vld [vmem:[%s3] sm:$0xff]
        %v701 = vld [vmem:[%s3 + $0x8] sm:$0xff]
        %v702 = vld [vmem:[%s3 + $0x10] sm:$0xff]
        %v703 = vld [vmem:[%s3 + $0x18] sm:$0xff]
        %705 = vset.pattern.permute.xlu0 0
        %706 = vperm.xlu0 %705, %v700
        %v707 = vpop.permute.xlu0 %706
        %710 = vset.pattern.permute.xlu0 0
        %711 = vperm.xlu0 %710, %v701
        %v712 = vpop.permute.xlu0 %711
        %715 = vset.pattern.permute.xlu0 0
        %716 = vperm.xlu0 %715, %v702
        %v717 = vpop.permute.xlu0 %716
        %720 = vset.pattern.permute.xlu0 0
        %721 = vperm.xlu0 %720, %v703
        %v722 = vpop.permute.xlu0 %721
        %v732 = vunpack.c.l.b16 %v692
        %v733 = vunpack.c.h.b16 %v692
        %v734 = vunpack.c.l.b16 %v693
        %v735 = vunpack.c.l.b16 %v694
        %v736 = vunpack.c.h.b16 %v694
        %v737 = vunpack.c.l.b16 %v695
        %v738 = vunpack.c.l.b16 %v696
        %v739 = vunpack.c.h.b16 %v696
        %v740 = vunpack.c.l.b16 %v697
        %v741 = vunpack.c.l.b16 %v698
        %v742 = vunpack.c.h.b16 %v698
        %v743 = vunpack.c.l.b16 %v699
        %v744 = vpack.c.b16 %v735, %v732
        %v745 = vpack.c.b16 %v736, %v733
        %v746 = vpack.c.b16 %v737, %v734
        %v747 = vpack.c.b16 %v741, %v738
        %v748 = vpack.c.b16 %v742, %v739
        %v749 = vpack.c.b16 %v743, %v740
        %vm754 = vcmask 261120
        %v756 = vsel %vm754, %v746, 0
        %v759 = vsel %vm754, %v749, 0
        %761 = vmatpush.bf16.msra.mxu0 %v659
        %762 = vmatpush.bf16.msra.mxu0 %v656
        %763 = vmatpush.bf16.msra.mxu0 %v653
        %764 = vmatpush.bf16.msra.mxu0 %v650
        %765 = vmatpush.bf16.msra.mxu0 %v647
        %766 = vmatpush.bf16.msra.mxu0 %v644
        %767 = vmatpush.bf16.msra.mxu0 %v641
        %768 = vmatpush.bf16.msra.mxu0 %v638
        %769 = vmatmul.bf16.gmra.mxu0 %v744
        %v770 = vpop.f32.mrf.mxu0
        %v771 = vadd.f32 %v707, %v770
        %v772 = vpop.f32.mrf.mxu0
        %v773 = vadd.f32 %v712, %v772
        %774 = vmatmul.bf16.gmra.mxu0 %v747
        %v775 = vpop.f32.mrf.mxu0
        %v776 = vadd.f32 %v717, %v775
        %v777 = vpop.f32.mrf.mxu0
        %v778 = vadd.f32 %v722, %v777
        %779 = vdwg.mxu0
        %780 = vmatpush.bf16.msra.mxu0 %v683
        %781 = vmatpush.bf16.msra.mxu0 %v680
        %782 = vmatpush.bf16.msra.mxu0 %v677
        %783 = vmatpush.bf16.msra.mxu0 %v674
        %784 = vmatpush.bf16.msra.mxu0 %v671
        %785 = vmatpush.bf16.msra.mxu0 %v668
        %786 = vmatpush.bf16.msra.mxu0 %v665
        %787 = vmatpush.bf16.msra.mxu0 %v662
        %788 = vmatmul.bf16.gmra.mxu0 %v745
        %v789 = vpop.f32.mrf.mxu0
        %v790 = vadd.f32 %v771, %v789
        %v791 = vpop.f32.mrf.mxu0
        %v792 = vadd.f32 %v773, %v791
        %793 = vmatmul.bf16.gmra.mxu0 %v748
        %v794 = vpop.f32.mrf.mxu0
        %v795 = vadd.f32 %v776, %v794
        %v796 = vpop.f32.mrf.mxu0
        %v797 = vadd.f32 %v778, %v796
        %798 = vdwg.mxu0
        %799 = vmatpush.bf16.msra.mxu0 0
        %800 = vmatpush.bf16.msra.mxu0 0
        %801 = vmatpush.bf16.msra.mxu0 0
        %802 = vmatpush.bf16.msra.mxu0 0
        %803 = vmatpush.bf16.msra.mxu0 0
        %804 = vmatpush.bf16.msra.mxu0 0
        %805 = vmatpush.bf16.msra.mxu0 %v689
        %806 = vmatpush.bf16.msra.mxu0 %v686
        %807 = vmatmul.bf16.gmra.mxu0 %v756
        %v808 = vpop.f32.mrf.mxu0
        %v809 = vadd.f32 %v790, %v808
        %v810 = vpop.f32.mrf.mxu0
        %v811 = vadd.f32 %v792, %v810
        %812 = vmatmul.bf16.gmra.mxu0 %v759
        %v813 = vpop.f32.mrf.mxu0
        %v814 = vadd.f32 %v795, %v813
        %v815 = vpop.f32.mrf.mxu0
        %v816 = vadd.f32 %v797, %v815
        %817 = vdwg.mxu0
        %818 = vmatpush.bf16.msra.mxu0 %v660
        %819 = vmatpush.bf16.msra.mxu0 %v657
        %820 = vmatpush.bf16.msra.mxu0 %v654
        %821 = vmatpush.bf16.msra.mxu0 %v651
        %822 = vmatpush.bf16.msra.mxu0 %v648
        %823 = vmatpush.bf16.msra.mxu0 %v645
        %824 = vmatpush.bf16.msra.mxu0 %v642
        %825 = vmatpush.bf16.msra.mxu0 %v639
        %826 = vmatmul.bf16.gmra.mxu0 %v744
        %v827 = vpop.f32.mrf.mxu0
        %v828 = vadd.f32 %v707, %v827
        %v829 = vpop.f32.mrf.mxu0
        %v830 = vadd.f32 %v712, %v829
        %831 = vmatmul.bf16.gmra.mxu0 %v747
        %v832 = vpop.f32.mrf.mxu0
        %v833 = vadd.f32 %v717, %v832
        %v834 = vpop.f32.mrf.mxu0
        %v835 = vadd.f32 %v722, %v834
        %836 = vdwg.mxu0
        %837 = vmatpush.bf16.msra.mxu0 %v684
        %838 = vmatpush.bf16.msra.mxu0 %v681
        %839 = vmatpush.bf16.msra.mxu0 %v678
        %840 = vmatpush.bf16.msra.mxu0 %v675
        %841 = vmatpush.bf16.msra.mxu0 %v672
        %842 = vmatpush.bf16.msra.mxu0 %v669
        %843 = vmatpush.bf16.msra.mxu0 %v666
        %844 = vmatpush.bf16.msra.mxu0 %v663
        %845 = vmatmul.bf16.gmra.mxu0 %v745
        %v846 = vpop.f32.mrf.mxu0
        %v847 = vadd.f32 %v828, %v846
        %v848 = vpop.f32.mrf.mxu0
        %v849 = vadd.f32 %v830, %v848
        %850 = vmatmul.bf16.gmra.mxu0 %v748
        %v851 = vpop.f32.mrf.mxu0
        %v852 = vadd.f32 %v833, %v851
        %v853 = vpop.f32.mrf.mxu0
        %v854 = vadd.f32 %v835, %v853
        %855 = vdwg.mxu0
        %856 = vmatpush.bf16.msra.mxu0 0
        %857 = vmatpush.bf16.msra.mxu0 0
        %858 = vmatpush.bf16.msra.mxu0 0
        %859 = vmatpush.bf16.msra.mxu0 0
        %860 = vmatpush.bf16.msra.mxu0 0
        %861 = vmatpush.bf16.msra.mxu0 0
        %862 = vmatpush.bf16.msra.mxu0 %v690
        %863 = vmatpush.bf16.msra.mxu0 %v687
        %864 = vmatmul.bf16.gmra.mxu0 %v756
        %v865 = vpop.f32.mrf.mxu0
        %v866 = vadd.f32 %v847, %v865
        %v867 = vpop.f32.mrf.mxu0
        %v868 = vadd.f32 %v849, %v867
        %869 = vmatmul.bf16.gmra.mxu0 %v759
        %v870 = vpop.f32.mrf.mxu0
        %v871 = vadd.f32 %v852, %v870
        %v872 = vpop.f32.mrf.mxu0
        %v873 = vadd.f32 %v854, %v872
        %874 = vdwg.mxu0
        %875 = vmatpush.bf16.msra.mxu0 %v661
        %876 = vmatpush.bf16.msra.mxu0 %v658
        %877 = vmatpush.bf16.msra.mxu0 %v655
        %878 = vmatpush.bf16.msra.mxu0 %v652
        %879 = vmatpush.bf16.msra.mxu0 %v649
        %880 = vmatpush.bf16.msra.mxu0 %v646
        %881 = vmatpush.bf16.msra.mxu0 %v643
        %882 = vmatpush.bf16.msra.mxu0 %v640
        %883 = vmatmul.bf16.gmra.mxu0 %v744
        %v884 = vpop.f32.mrf.mxu0
        %v885 = vadd.f32 %v707, %v884
        %v886 = vpop.f32.mrf.mxu0
        %v887 = vadd.f32 %v712, %v886
        %888 = vmatmul.bf16.gmra.mxu0 %v747
        %v889 = vpop.f32.mrf.mxu0
        %v890 = vadd.f32 %v717, %v889
        %v891 = vpop.f32.mrf.mxu0
        %v892 = vadd.f32 %v722, %v891
        %893 = vdwg.mxu0
        %894 = vmatpush.bf16.msra.mxu0 %v685
        %895 = vmatpush.bf16.msra.mxu0 %v682
        %896 = vmatpush.bf16.msra.mxu0 %v679
        %897 = vmatpush.bf16.msra.mxu0 %v676
        %898 = vmatpush.bf16.msra.mxu0 %v673
        %899 = vmatpush.bf16.msra.mxu0 %v670
        %900 = vmatpush.bf16.msra.mxu0 %v667
        %901 = vmatpush.bf16.msra.mxu0 %v664
        %902 = vmatmul.bf16.gmra.mxu0 %v745
        %v903 = vpop.f32.mrf.mxu0
        %v904 = vadd.f32 %v885, %v903
        %v905 = vpop.f32.mrf.mxu0
        %v906 = vadd.f32 %v887, %v905
        %907 = vmatmul.bf16.gmra.mxu0 %v748
        %v908 = vpop.f32.mrf.mxu0
        %v909 = vadd.f32 %v890, %v908
        %v910 = vpop.f32.mrf.mxu0
        %v911 = vadd.f32 %v892, %v910
        %912 = vdwg.mxu0
        %913 = vmatpush.bf16.msra.mxu0 0
        %914 = vmatpush.bf16.msra.mxu0 0
        %915 = vmatpush.bf16.msra.mxu0 0
        %916 = vmatpush.bf16.msra.mxu0 0
        %917 = vmatpush.bf16.msra.mxu0 0
        %918 = vmatpush.bf16.msra.mxu0 0
        %919 = vmatpush.bf16.msra.mxu0 %v691
        %920 = vmatpush.bf16.msra.mxu0 %v688
        %921 = vmatmul.bf16.gmra.mxu0 %v756
        %v922 = vpop.f32.mrf.mxu0
        %v923 = vadd.f32 %v904, %v922
        %v924 = vpop.f32.mrf.mxu0
        %v925 = vadd.f32 %v906, %v924
        %926 = vmatmul.bf16.gmra.mxu0 %v759
        %v927 = vpop.f32.mrf.mxu0
        %v928 = vadd.f32 %v909, %v927
        %v929 = vpop.f32.mrf.mxu0
        %v930 = vadd.f32 %v911, %v929
        %931 = vdwg.mxu0
        %v932 = vmax.f32 %v809, 0.0
        %v933 = vmax.f32 %v866, 0.0
        %v934 = vmax.f32 %v923, 0.0
        %v935 = vmax.f32 %v811, 0.0
        %v936 = vmax.f32 %v868, 0.0
        %v937 = vmax.f32 %v925, 0.0
        %v938 = vmax.f32 %v814, 0.0
        %v939 = vmax.f32 %v871, 0.0
        %v940 = vmax.f32 %v928, 0.0
        %v941 = vmax.f32 %v816, 0.0
        %v942 = vmax.f32 %v873, 0.0
        %v943 = vmax.f32 %v930, 0.0
        %v945 = vperm.slane %v339, 0
        %v946 = vperm.slane %v339, 1
        %v947 = vperm.slane %v339, 2
        %v951 = vmul.f32 %v932, %v945
        %v952 = vmul.f32 %v933, %v946
        %v953 = vmul.f32 %v934, %v947
        %v954 = vmul.f32 %v935, %v945
        %v955 = vmul.f32 %v936, %v946
        %v956 = vmul.f32 %v937, %v947
        %v957 = vmul.f32 %v938, %v945
        %v958 = vmul.f32 %v939, %v946
        %v959 = vmul.f32 %v940, %v947
        %v960 = vmul.f32 %v941, %v945
        %v961 = vmul.f32 %v942, %v946
        %v962 = vmul.f32 %v943, %v947
        %963 = vrot.lane.b32.xlu0 %v951, 19
        %v964 = vpop.permute.xlu0 %963
        %965 = vrot.lane.b32.xlu0 %v954, 19
        %v966 = vpop.permute.xlu0 %965
        %967 = vrot.lane.b32.xlu0 %v957, 19
        %v968 = vpop.permute.xlu0 %967
        %969 = vrot.lane.b32.xlu0 %v960, 19
        %v970 = vpop.permute.xlu0 %969
        %971 = vrot.lane.b32.xlu0 %v952, 19
        %v972 = vpop.permute.xlu0 %971
        %973 = vrot.lane.b32.xlu0 %v955, 19
        %v974 = vpop.permute.xlu0 %973
        %975 = vrot.lane.b32.xlu0 %v958, 19
        %v976 = vpop.permute.xlu0 %975
        %977 = vrot.lane.b32.xlu0 %v961, 19
        %v978 = vpop.permute.xlu0 %977
        %979 = vrot.lane.b32.xlu0 %v953, 19
        %v980 = vpop.permute.xlu0 %979
        %981 = vrot.lane.b32.xlu0 %v956, 19
        %v982 = vpop.permute.xlu0 %981
        %983 = vrot.lane.b32.xlu0 %v959, 19
        %v984 = vpop.permute.xlu0 %983
        %985 = vrot.lane.b32.xlu0 %v962, 19
        %v986 = vpop.permute.xlu0 %985
        %v987 = vsel %vm366, %v972, %v980
        %v988 = vsel %vm366, %v974, %v982
        %v989 = vsel %vm366, %v976, %v984
        %v990 = vsel %vm366, %v978, %v986
        %v991 = vsel %vm366, %v964, %v972
        %v992 = vsel %vm366, %v966, %v974
        %v993 = vsel %vm366, %v968, %v976
        %v994 = vsel %vm366, %v970, %v978
        %v995 = vsel %vm366, %v980, %v964
        %v996 = vsel %vm366, %v982, %v966
        %v997 = vsel %vm366, %v984, %v968
        %v998 = vsel %vm366, %v986, %v970
        %999 = vrot.lane.b32.xlu0 %v951, 18
        %v1000 = vpop.permute.xlu0 %999
        %1001 = vrot.lane.b32.xlu0 %v954, 18
        %v1002 = vpop.permute.xlu0 %1001
        %1003 = vrot.lane.b32.xlu0 %v957, 18
        %v1004 = vpop.permute.xlu0 %1003
        %1005 = vrot.lane.b32.xlu0 %v960, 18
        %v1006 = vpop.permute.xlu0 %1005
        %1007 = vrot.lane.b32.xlu0 %v952, 18
        %v1008 = vpop.permute.xlu0 %1007
        %1009 = vrot.lane.b32.xlu0 %v955, 18
        %v1010 = vpop.permute.xlu0 %1009
        %1011 = vrot.lane.b32.xlu0 %v958, 18
        %v1012 = vpop.permute.xlu0 %1011
        %1013 = vrot.lane.b32.xlu0 %v961, 18
        %v1014 = vpop.permute.xlu0 %1013
        %1015 = vrot.lane.b32.xlu0 %v953, 18
        %v1016 = vpop.permute.xlu0 %1015
        %1017 = vrot.lane.b32.xlu0 %v956, 18
        %v1018 = vpop.permute.xlu0 %1017
        %1019 = vrot.lane.b32.xlu0 %v959, 18
        %v1020 = vpop.permute.xlu0 %1019
        %1021 = vrot.lane.b32.xlu0 %v962, 18
        %v1022 = vpop.permute.xlu0 %1021
        %v1023 = vsel %vm403, %v1008, %v1016
        %v1024 = vsel %vm403, %v1010, %v1018
        %v1025 = vsel %vm403, %v1012, %v1020
        %v1026 = vsel %vm403, %v1014, %v1022
        %v1027 = vsel %vm403, %v1000, %v1008
        %v1028 = vsel %vm403, %v1002, %v1010
        %v1029 = vsel %vm403, %v1004, %v1012
        %v1030 = vsel %vm403, %v1006, %v1014
        %v1031 = vsel %vm403, %v1016, %v1000
        %v1032 = vsel %vm403, %v1018, %v1002
        %v1033 = vsel %vm403, %v1020, %v1004
        %v1034 = vsel %vm403, %v1022, %v1006
        %1035 = vrot.lane.b32.xlu0 %v951, 17
        %v1036 = vpop.permute.xlu0 %1035
        %1037 = vrot.lane.b32.xlu0 %v954, 17
        %v1038 = vpop.permute.xlu0 %1037
        %1039 = vrot.lane.b32.xlu0 %v957, 17
        %v1040 = vpop.permute.xlu0 %1039
        %1041 = vrot.lane.b32.xlu0 %v960, 17
        %v1042 = vpop.permute.xlu0 %1041
        %1043 = vrot.lane.b32.xlu0 %v952, 17
        %v1044 = vpop.permute.xlu0 %1043
        %1045 = vrot.lane.b32.xlu0 %v955, 17
        %v1046 = vpop.permute.xlu0 %1045
        %1047 = vrot.lane.b32.xlu0 %v958, 17
        %v1048 = vpop.permute.xlu0 %1047
        %1049 = vrot.lane.b32.xlu0 %v961, 17
        %v1050 = vpop.permute.xlu0 %1049
        %1051 = vrot.lane.b32.xlu0 %v953, 17
        %v1052 = vpop.permute.xlu0 %1051
        %1053 = vrot.lane.b32.xlu0 %v956, 17
        %v1054 = vpop.permute.xlu0 %1053
        %1055 = vrot.lane.b32.xlu0 %v959, 17
        %v1056 = vpop.permute.xlu0 %1055
        %1057 = vrot.lane.b32.xlu0 %v962, 17
        %v1058 = vpop.permute.xlu0 %1057
        %v1059 = vsel %vm440, %v1044, %v1052
        %v1060 = vsel %vm440, %v1046, %v1054
        %v1061 = vsel %vm440, %v1048, %v1056
        %v1062 = vsel %vm440, %v1050, %v1058
        %v1063 = vsel %vm440, %v1036, %v1044
        %v1064 = vsel %vm440, %v1038, %v1046
        %v1065 = vsel %vm440, %v1040, %v1048
        %v1066 = vsel %vm440, %v1042, %v1050
        %v1067 = vsel %vm440, %v1052, %v1036
        %v1068 = vsel %vm440, %v1054, %v1038
        %v1069 = vsel %vm440, %v1056, %v1040
        %v1070 = vsel %vm440, %v1058, %v1042
        %1071 = vrot.lane.b32.xlu0 %v951, 1
        %v1072 = vpop.permute.xlu0 %1071
        %1073 = vrot.lane.b32.xlu0 %v954, 1
        %v1074 = vpop.permute.xlu0 %1073
        %1075 = vrot.lane.b32.xlu0 %v957, 1
        %v1076 = vpop.permute.xlu0 %1075
        %1077 = vrot.lane.b32.xlu0 %v960, 1
        %v1078 = vpop.permute.xlu0 %1077
        %1079 = vrot.lane.b32.xlu0 %v952, 1
        %v1080 = vpop.permute.xlu0 %1079
        %1081 = vrot.lane.b32.xlu0 %v955, 1
        %v1082 = vpop.permute.xlu0 %1081
        %1083 = vrot.lane.b32.xlu0 %v958, 1
        %v1084 = vpop.permute.xlu0 %1083
        %1085 = vrot.lane.b32.xlu0 %v961, 1
        %v1086 = vpop.permute.xlu0 %1085
        %1087 = vrot.lane.b32.xlu0 %v953, 1
        %v1088 = vpop.permute.xlu0 %1087
        %1089 = vrot.lane.b32.xlu0 %v956, 1
        %v1090 = vpop.permute.xlu0 %1089
        %1091 = vrot.lane.b32.xlu0 %v959, 1
        %v1092 = vpop.permute.xlu0 %1091
        %1093 = vrot.lane.b32.xlu0 %v962, 1
        %v1094 = vpop.permute.xlu0 %1093
        %v1095 = vsel %vm477, %v1080, %v1088
        %v1096 = vsel %vm477, %v1082, %v1090
        %v1097 = vsel %vm477, %v1084, %v1092
        %v1098 = vsel %vm477, %v1086, %v1094
        %v1099 = vsel %vm477, %v1072, %v1080
        %v1100 = vsel %vm477, %v1074, %v1082
        %v1101 = vsel %vm477, %v1076, %v1084
        %v1102 = vsel %vm477, %v1078, %v1086
        %v1103 = vsel %vm477, %v1088, %v1072
        %v1104 = vsel %vm477, %v1090, %v1074
        %v1105 = vsel %vm477, %v1092, %v1076
        %v1106 = vsel %vm477, %v1094, %v1078
        %1107 = vrot.lane.b32.xlu0 %v951, 127
        %v1108 = vpop.permute.xlu0 %1107
        %1109 = vrot.lane.b32.xlu0 %v954, 127
        %v1110 = vpop.permute.xlu0 %1109
        %1111 = vrot.lane.b32.xlu0 %v957, 127
        %v1112 = vpop.permute.xlu0 %1111
        %1113 = vrot.lane.b32.xlu0 %v960, 127
        %v1114 = vpop.permute.xlu0 %1113
        %1115 = vrot.lane.b32.xlu0 %v952, 127
        %v1116 = vpop.permute.xlu0 %1115
        %1117 = vrot.lane.b32.xlu0 %v955, 127
        %v1118 = vpop.permute.xlu0 %1117
        %1119 = vrot.lane.b32.xlu0 %v958, 127
        %v1120 = vpop.permute.xlu0 %1119
        %1121 = vrot.lane.b32.xlu0 %v961, 127
        %v1122 = vpop.permute.xlu0 %1121
        %1123 = vrot.lane.b32.xlu0 %v953, 127
        %v1124 = vpop.permute.xlu0 %1123
        %1125 = vrot.lane.b32.xlu0 %v956, 127
        %v1126 = vpop.permute.xlu0 %1125
        %1127 = vrot.lane.b32.xlu0 %v959, 127
        %v1128 = vpop.permute.xlu0 %1127
        %1129 = vrot.lane.b32.xlu0 %v962, 127
        %v1130 = vpop.permute.xlu0 %1129
        %v1131 = vsel %vm514, %v1116, %v1124
        %v1132 = vsel %vm514, %v1118, %v1126
        %v1133 = vsel %vm514, %v1120, %v1128
        %v1134 = vsel %vm514, %v1122, %v1130
        %v1135 = vsel %vm514, %v1108, %v1116
        %v1136 = vsel %vm514, %v1110, %v1118
        %v1137 = vsel %vm514, %v1112, %v1120
        %v1138 = vsel %vm514, %v1114, %v1122
        %v1139 = vsel %vm514, %v1124, %v1108
        %v1140 = vsel %vm514, %v1126, %v1110
        %v1141 = vsel %vm514, %v1128, %v1112
        %v1142 = vsel %vm514, %v1130, %v1114
        %1143 = vrot.lane.b32.xlu0 %v951, 111
        %v1144 = vpop.permute.xlu0 %1143
        %1145 = vrot.lane.b32.xlu0 %v954, 111
        %v1146 = vpop.permute.xlu0 %1145
        %1147 = vrot.lane.b32.xlu0 %v957, 111
        %v1148 = vpop.permute.xlu0 %1147
        %1149 = vrot.lane.b32.xlu0 %v960, 111
        %v1150 = vpop.permute.xlu0 %1149
        %1151 = vrot.lane.b32.xlu0 %v952, 111
        %v1152 = vpop.permute.xlu0 %1151
        %1153 = vrot.lane.b32.xlu0 %v955, 111
        %v1154 = vpop.permute.xlu0 %1153
        %1155 = vrot.lane.b32.xlu0 %v958, 111
        %v1156 = vpop.permute.xlu0 %1155
        %1157 = vrot.lane.b32.xlu0 %v961, 111
        %v1158 = vpop.permute.xlu0 %1157
        %1159 = vrot.lane.b32.xlu0 %v953, 111
        %v1160 = vpop.permute.xlu0 %1159
        %1161 = vrot.lane.b32.xlu0 %v956, 111
        %v1162 = vpop.permute.xlu0 %1161
        %1163 = vrot.lane.b32.xlu0 %v959, 111
        %v1164 = vpop.permute.xlu0 %1163
        %1165 = vrot.lane.b32.xlu0 %v962, 111
        %v1166 = vpop.permute.xlu0 %1165
        %v1167 = vsel %vm551, %v1152, %v1160
        %v1168 = vsel %vm551, %v1154, %v1162
        %v1169 = vsel %vm551, %v1156, %v1164
        %v1170 = vsel %vm551, %v1158, %v1166
        %v1171 = vsel %vm551, %v1144, %v1152
        %v1172 = vsel %vm551, %v1146, %v1154
        %v1173 = vsel %vm551, %v1148, %v1156
        %v1174 = vsel %vm551, %v1150, %v1158
        %v1175 = vsel %vm551, %v1160, %v1144
        %v1176 = vsel %vm551, %v1162, %v1146
        %v1177 = vsel %vm551, %v1164, %v1148
        %v1178 = vsel %vm551, %v1166, %v1150
        %1179 = vrot.lane.b32.xlu0 %v951, 110
        %v1180 = vpop.permute.xlu0 %1179
        %1181 = vrot.lane.b32.xlu0 %v954, 110
        %v1182 = vpop.permute.xlu0 %1181
        %1183 = vrot.lane.b32.xlu0 %v957, 110
        %v1184 = vpop.permute.xlu0 %1183
        %1185 = vrot.lane.b32.xlu0 %v960, 110
        %v1186 = vpop.permute.xlu0 %1185
        %1187 = vrot.lane.b32.xlu0 %v952, 110
        %v1188 = vpop.permute.xlu0 %1187
        %1189 = vrot.lane.b32.xlu0 %v955, 110
        %v1190 = vpop.permute.xlu0 %1189
        %1191 = vrot.lane.b32.xlu0 %v958, 110
        %v1192 = vpop.permute.xlu0 %1191
        %1193 = vrot.lane.b32.xlu0 %v961, 110
        %v1194 = vpop.permute.xlu0 %1193
        %1195 = vrot.lane.b32.xlu0 %v953, 110
        %v1196 = vpop.permute.xlu0 %1195
        %1197 = vrot.lane.b32.xlu0 %v956, 110
        %v1198 = vpop.permute.xlu0 %1197
        %1199 = vrot.lane.b32.xlu0 %v959, 110
        %v1200 = vpop.permute.xlu0 %1199
        %1201 = vrot.lane.b32.xlu0 %v962, 110
        %v1202 = vpop.permute.xlu0 %1201
        %v1203 = vsel %vm588, %v1188, %v1196
        %v1204 = vsel %vm588, %v1190, %v1198
        %v1205 = vsel %vm588, %v1192, %v1200
        %v1206 = vsel %vm588, %v1194, %v1202
        %v1207 = vsel %vm588, %v1180, %v1188
        %v1208 = vsel %vm588, %v1182, %v1190
        %v1209 = vsel %vm588, %v1184, %v1192
        %v1210 = vsel %vm588, %v1186, %v1194
        %v1211 = vsel %vm588, %v1196, %v1180
        %v1212 = vsel %vm588, %v1198, %v1182
        %v1213 = vsel %vm588, %v1200, %v1184
        %v1214 = vsel %vm588, %v1202, %v1186
        %1215 = vrot.lane.b32.xlu0 %v951, 109
        %v1216 = vpop.permute.xlu0 %1215
        %1217 = vrot.lane.b32.xlu0 %v954, 109
        %v1218 = vpop.permute.xlu0 %1217
        %1219 = vrot.lane.b32.xlu0 %v957, 109
        %v1220 = vpop.permute.xlu0 %1219
        %1221 = vrot.lane.b32.xlu0 %v960, 109
        %v1222 = vpop.permute.xlu0 %1221
        %1223 = vrot.lane.b32.xlu0 %v952, 109
        %v1224 = vpop.permute.xlu0 %1223
        %1225 = vrot.lane.b32.xlu0 %v955, 109
        %v1226 = vpop.permute.xlu0 %1225
        %1227 = vrot.lane.b32.xlu0 %v958, 109
        %v1228 = vpop.permute.xlu0 %1227
        %1229 = vrot.lane.b32.xlu0 %v961, 109
        %v1230 = vpop.permute.xlu0 %1229
        %1231 = vrot.lane.b32.xlu0 %v953, 109
        %v1232 = vpop.permute.xlu0 %1231
        %1233 = vrot.lane.b32.xlu0 %v956, 109
        %v1234 = vpop.permute.xlu0 %1233
        %1235 = vrot.lane.b32.xlu0 %v959, 109
        %v1236 = vpop.permute.xlu0 %1235
        %1237 = vrot.lane.b32.xlu0 %v962, 109
        %v1238 = vpop.permute.xlu0 %1237
        %v1239 = vsel %vm625, %v1224, %v1232
        %v1240 = vsel %vm625, %v1226, %v1234
        %v1241 = vsel %vm625, %v1228, %v1236
        %v1242 = vsel %vm625, %v1230, %v1238
        %v1243 = vsel %vm625, %v1216, %v1224
        %v1244 = vsel %vm625, %v1218, %v1226
        %v1245 = vsel %vm625, %v1220, %v1228
        %v1246 = vsel %vm625, %v1222, %v1230
        %v1247 = vsel %vm625, %v1232, %v1216
        %v1248 = vsel %vm625, %v1234, %v1218
        %v1249 = vsel %vm625, %v1236, %v1220
        %v1250 = vsel %vm625, %v1238, %v1222
        %v1251 = vpack.c.bf16 %v996, %v995
        %v1252 = vpack.c.bf16 %v992, %v991
        %v1253 = vpack.c.bf16 %v988, %v987
        %v1254 = vpack.c.bf16 %v998, %v997
        %v1255 = vpack.c.bf16 %v994, %v993
        %v1256 = vpack.c.bf16 %v990, %v989
        %v1257 = vpack.c.bf16 %v1032, %v1031
        %v1258 = vpack.c.bf16 %v1028, %v1027
        %v1259 = vpack.c.bf16 %v1024, %v1023
        %v1260 = vpack.c.bf16 %v1034, %v1033
        %v1261 = vpack.c.bf16 %v1030, %v1029
        %v1262 = vpack.c.bf16 %v1026, %v1025
        %v1263 = vpack.c.bf16 %v1068, %v1067
        %v1264 = vpack.c.bf16 %v1064, %v1063
        %v1265 = vpack.c.bf16 %v1060, %v1059
        %v1266 = vpack.c.bf16 %v1070, %v1069
        %v1267 = vpack.c.bf16 %v1066, %v1065
        %v1268 = vpack.c.bf16 %v1062, %v1061
        %v1269 = vpack.c.bf16 %v1104, %v1103
        %v1270 = vpack.c.bf16 %v1100, %v1099
        %v1271 = vpack.c.bf16 %v1096, %v1095
        %v1272 = vpack.c.bf16 %v1106, %v1105
        %v1273 = vpack.c.bf16 %v1102, %v1101
        %v1274 = vpack.c.bf16 %v1098, %v1097
        %v1275 = vpack.c.bf16 %v954, %v951
        %v1276 = vpack.c.bf16 %v955, %v952
        %v1277 = vpack.c.bf16 %v956, %v953
        %v1278 = vpack.c.bf16 %v960, %v957
        %v1279 = vpack.c.bf16 %v961, %v958
        %v1280 = vpack.c.bf16 %v962, %v959
        %v1281 = vpack.c.bf16 %v1136, %v1135
        %v1282 = vpack.c.bf16 %v1132, %v1131
        %v1283 = vpack.c.bf16 %v1140, %v1139
        %v1284 = vpack.c.bf16 %v1138, %v1137
        %v1285 = vpack.c.bf16 %v1134, %v1133
        %v1286 = vpack.c.bf16 %v1142, %v1141
        %v1287 = vpack.c.bf16 %v1172, %v1171
        %v1288 = vpack.c.bf16 %v1168, %v1167
        %v1289 = vpack.c.bf16 %v1176, %v1175
        %v1290 = vpack.c.bf16 %v1174, %v1173
        %v1291 = vpack.c.bf16 %v1170, %v1169
        %v1292 = vpack.c.bf16 %v1178, %v1177
        %v1293 = vpack.c.bf16 %v1208, %v1207
        %v1294 = vpack.c.bf16 %v1204, %v1203
        %v1295 = vpack.c.bf16 %v1212, %v1211
        %v1296 = vpack.c.bf16 %v1210, %v1209
        %v1297 = vpack.c.bf16 %v1206, %v1205
        %v1298 = vpack.c.bf16 %v1214, %v1213
        %v1299 = vpack.c.bf16 %v1244, %v1243
        %v1300 = vpack.c.bf16 %v1240, %v1239
        %v1301 = vpack.c.bf16 %v1248, %v1247
        %v1302 = vpack.c.bf16 %v1246, %v1245
        %v1303 = vpack.c.bf16 %v1242, %v1241
        %v1304 = vpack.c.bf16 %v1250, %v1249
        %v1305 = vld [vmem:[%s4] sm:$0xff]
        %v1306 = vld [vmem:[%s4 + $0x8] sm:$0xf]
        %v1307 = vld [vmem:[%s4 + $0xc] sm:$0xff]
        %v1308 = vld [vmem:[%s4 + $0x14] sm:$0xf]
        %v1309 = vld [vmem:[%s4 + $0x18] sm:$0xff]
        %v1310 = vld [vmem:[%s4 + $0x20] sm:$0xf]
        %v1311 = vld [vmem:[%s4 + $0x24] sm:$0xff]
        %v1312 = vld [vmem:[%s4 + $0x2c] sm:$0xf]
        %v1313 = vld [vmem:[%s5] sm:$0xff]
        %v1314 = vld [vmem:[%s5 + $0x8] sm:$0xff]
        %v1315 = vld [vmem:[%s5 + $0x10] sm:$0xff]
        %v1316 = vld [vmem:[%s5 + $0x18] sm:$0xff]
        %1318 = vset.pattern.permute.xlu0 0
        %1319 = vperm.xlu0 %1318, %v1313
        %v1320 = vpop.permute.xlu0 %1319
        %1323 = vset.pattern.permute.xlu0 0
        %1324 = vperm.xlu0 %1323, %v1314
        %v1325 = vpop.permute.xlu0 %1324
        %1328 = vset.pattern.permute.xlu0 0
        %1329 = vperm.xlu0 %1328, %v1315
        %v1330 = vpop.permute.xlu0 %1329
        %1333 = vset.pattern.permute.xlu0 0
        %1334 = vperm.xlu0 %1333, %v1316
        %v1335 = vpop.permute.xlu0 %1334
        %v1345 = vunpack.c.l.b16 %v1305
        %v1346 = vunpack.c.h.b16 %v1305
        %v1347 = vunpack.c.l.b16 %v1306
        %v1348 = vunpack.c.l.b16 %v1307
        %v1349 = vunpack.c.h.b16 %v1307
        %v1350 = vunpack.c.l.b16 %v1308
        %v1351 = vunpack.c.l.b16 %v1309
        %v1352 = vunpack.c.h.b16 %v1309
        %v1353 = vunpack.c.l.b16 %v1310
        %v1354 = vunpack.c.l.b16 %v1311
        %v1355 = vunpack.c.h.b16 %v1311
        %v1356 = vunpack.c.l.b16 %v1312
        %v1357 = vpack.c.b16 %v1348, %v1345
        %v1358 = vpack.c.b16 %v1349, %v1346
        %v1359 = vpack.c.b16 %v1350, %v1347
        %v1360 = vpack.c.b16 %v1354, %v1351
        %v1361 = vpack.c.b16 %v1355, %v1352
        %v1362 = vpack.c.b16 %v1356, %v1353
        %v1368 = vsel %vm754, %v1359, 0
        %v1371 = vsel %vm754, %v1362, 0
        %1373 = vmatpush.bf16.msra.mxu0 %v1272
        %1374 = vmatpush.bf16.msra.mxu0 %v1269
        %1375 = vmatpush.bf16.msra.mxu0 %v1266
        %1376 = vmatpush.bf16.msra.mxu0 %v1263
        %1377 = vmatpush.bf16.msra.mxu0 %v1260
        %1378 = vmatpush.bf16.msra.mxu0 %v1257
        %1379 = vmatpush.bf16.msra.mxu0 %v1254
        %1380 = vmatpush.bf16.msra.mxu0 %v1251
        %1381 = vmatmul.bf16.gmra.mxu0 %v1357
        %v1382 = vpop.f32.mrf.mxu0
        %v1383 = vadd.f32 %v1320, %v1382
        %v1384 = vpop.f32.mrf.mxu0
        %v1385 = vadd.f32 %v1325, %v1384
        %1386 = vmatmul.bf16.gmra.mxu0 %v1360
        %v1387 = vpop.f32.mrf.mxu0
        %v1388 = vadd.f32 %v1330, %v1387
        %v1389 = vpop.f32.mrf.mxu0
        %v1390 = vadd.f32 %v1335, %v1389
        %1391 = vdwg.mxu0
        %1392 = vmatpush.bf16.msra.mxu0 %v1296
        %1393 = vmatpush.bf16.msra.mxu0 %v1293
        %1394 = vmatpush.bf16.msra.mxu0 %v1290
        %1395 = vmatpush.bf16.msra.mxu0 %v1287
        %1396 = vmatpush.bf16.msra.mxu0 %v1284
        %1397 = vmatpush.bf16.msra.mxu0 %v1281
        %1398 = vmatpush.bf16.msra.mxu0 %v1278
        %1399 = vmatpush.bf16.msra.mxu0 %v1275
        %1400 = vmatmul.bf16.gmra.mxu0 %v1358
        %v1401 = vpop.f32.mrf.mxu0
        %v1402 = vadd.f32 %v1383, %v1401
        %v1403 = vpop.f32.mrf.mxu0
        %v1404 = vadd.f32 %v1385, %v1403
        %1405 = vmatmul.bf16.gmra.mxu0 %v1361
        %v1406 = vpop.f32.mrf.mxu0
        %v1407 = vadd.f32 %v1388, %v1406
        %v1408 = vpop.f32.mrf.mxu0
        %v1409 = vadd.f32 %v1390, %v1408
        %1410 = vdwg.mxu0
        %1411 = vmatpush.bf16.msra.mxu0 0
        %1412 = vmatpush.bf16.msra.mxu0 0
        %1413 = vmatpush.bf16.msra.mxu0 0
        %1414 = vmatpush.bf16.msra.mxu0 0
        %1415 = vmatpush.bf16.msra.mxu0 0
        %1416 = vmatpush.bf16.msra.mxu0 0
        %1417 = vmatpush.bf16.msra.mxu0 %v1302
        %1418 = vmatpush.bf16.msra.mxu0 %v1299
        %1419 = vmatmul.bf16.gmra.mxu0 %v1368
        %v1420 = vpop.f32.mrf.mxu0
        %v1421 = vadd.f32 %v1402, %v1420
        %v1422 = vpop.f32.mrf.mxu0
        %v1423 = vadd.f32 %v1404, %v1422
        %1424 = vmatmul.bf16.gmra.mxu0 %v1371
        %v1425 = vpop.f32.mrf.mxu0
        %v1426 = vadd.f32 %v1407, %v1425
        %v1427 = vpop.f32.mrf.mxu0
        %v1428 = vadd.f32 %v1409, %v1427
        %1429 = vdwg.mxu0
        %1430 = vmatpush.bf16.msra.mxu0 %v1273
        %1431 = vmatpush.bf16.msra.mxu0 %v1270
        %1432 = vmatpush.bf16.msra.mxu0 %v1267
        %1433 = vmatpush.bf16.msra.mxu0 %v1264
        %1434 = vmatpush.bf16.msra.mxu0 %v1261
        %1435 = vmatpush.bf16.msra.mxu0 %v1258
        %1436 = vmatpush.bf16.msra.mxu0 %v1255
        %1437 = vmatpush.bf16.msra.mxu0 %v1252
        %1438 = vmatmul.bf16.gmra.mxu0 %v1357
        %v1439 = vpop.f32.mrf.mxu0
        %v1440 = vadd.f32 %v1320, %v1439
        %v1441 = vpop.f32.mrf.mxu0
        %v1442 = vadd.f32 %v1325, %v1441
        %1443 = vmatmul.bf16.gmra.mxu0 %v1360
        %v1444 = vpop.f32.mrf.mxu0
        %v1445 = vadd.f32 %v1330, %v1444
        %v1446 = vpop.f32.mrf.mxu0
        %v1447 = vadd.f32 %v1335, %v1446
        %1448 = vdwg.mxu0
        %1449 = vmatpush.bf16.msra.mxu0 %v1297
        %1450 = vmatpush.bf16.msra.mxu0 %v1294
        %1451 = vmatpush.bf16.msra.mxu0 %v1291
        %1452 = vmatpush.bf16.msra.mxu0 %v1288
        %1453 = vmatpush.bf16.msra.mxu0 %v1285
        %1454 = vmatpush.bf16.msra.mxu0 %v1282
        %1455 = vmatpush.bf16.msra.mxu0 %v1279
        %1456 = vmatpush.bf16.msra.mxu0 %v1276
        %1457 = vmatmul.bf16.gmra.mxu0 %v1358
        %v1458 = vpop.f32.mrf.mxu0
        %v1459 = vadd.f32 %v1440, %v1458
        %v1460 = vpop.f32.mrf.mxu0
        %v1461 = vadd.f32 %v1442, %v1460
        %1462 = vmatmul.bf16.gmra.mxu0 %v1361
        %v1463 = vpop.f32.mrf.mxu0
        %v1464 = vadd.f32 %v1445, %v1463
        %v1465 = vpop.f32.mrf.mxu0
        %v1466 = vadd.f32 %v1447, %v1465
        %1467 = vdwg.mxu0
        %1468 = vmatpush.bf16.msra.mxu0 0
        %1469 = vmatpush.bf16.msra.mxu0 0
        %1470 = vmatpush.bf16.msra.mxu0 0
        %1471 = vmatpush.bf16.msra.mxu0 0
        %1472 = vmatpush.bf16.msra.mxu0 0
        %1473 = vmatpush.bf16.msra.mxu0 0
        %1474 = vmatpush.bf16.msra.mxu0 %v1303
        %1475 = vmatpush.bf16.msra.mxu0 %v1300
        %1476 = vmatmul.bf16.gmra.mxu0 %v1368
        %v1477 = vpop.f32.mrf.mxu0
        %v1478 = vadd.f32 %v1459, %v1477
        %v1479 = vpop.f32.mrf.mxu0
        %v1480 = vadd.f32 %v1461, %v1479
        %1481 = vmatmul.bf16.gmra.mxu0 %v1371
        %v1482 = vpop.f32.mrf.mxu0
        %v1483 = vadd.f32 %v1464, %v1482
        %v1484 = vpop.f32.mrf.mxu0
        %v1485 = vadd.f32 %v1466, %v1484
        %1486 = vdwg.mxu0
        %1487 = vmatpush.bf16.msra.mxu0 %v1274
        %1488 = vmatpush.bf16.msra.mxu0 %v1271
        %1489 = vmatpush.bf16.msra.mxu0 %v1268
        %1490 = vmatpush.bf16.msra.mxu0 %v1265
        %1491 = vmatpush.bf16.msra.mxu0 %v1262
        %1492 = vmatpush.bf16.msra.mxu0 %v1259
        %1493 = vmatpush.bf16.msra.mxu0 %v1256
        %1494 = vmatpush.bf16.msra.mxu0 %v1253
        %1495 = vmatmul.bf16.gmra.mxu0 %v1357
        %v1496 = vpop.f32.mrf.mxu0
        %v1497 = vadd.f32 %v1320, %v1496
        %v1498 = vpop.f32.mrf.mxu0
        %v1499 = vadd.f32 %v1325, %v1498
        %1500 = vmatmul.bf16.gmra.mxu0 %v1360
        %v1501 = vpop.f32.mrf.mxu0
        %v1502 = vadd.f32 %v1330, %v1501
        %v1503 = vpop.f32.mrf.mxu0
        %v1504 = vadd.f32 %v1335, %v1503
        %1505 = vdwg.mxu0
        %1506 = vmatpush.bf16.msra.mxu0 %v1298
        %1507 = vmatpush.bf16.msra.mxu0 %v1295
        %1508 = vmatpush.bf16.msra.mxu0 %v1292
        %1509 = vmatpush.bf16.msra.mxu0 %v1289
        %1510 = vmatpush.bf16.msra.mxu0 %v1286
        %1511 = vmatpush.bf16.msra.mxu0 %v1283
        %1512 = vmatpush.bf16.msra.mxu0 %v1280
        %1513 = vmatpush.bf16.msra.mxu0 %v1277
        %1514 = vmatmul.bf16.gmra.mxu0 %v1358
        %v1515 = vpop.f32.mrf.mxu0
        %v1516 = vadd.f32 %v1497, %v1515
        %v1517 = vpop.f32.mrf.mxu0
        %v1518 = vadd.f32 %v1499, %v1517
        %1519 = vmatmul.bf16.gmra.mxu0 %v1361
        %v1520 = vpop.f32.mrf.mxu0
        %v1521 = vadd.f32 %v1502, %v1520
        %v1522 = vpop.f32.mrf.mxu0
        %v1523 = vadd.f32 %v1504, %v1522
        %1524 = vdwg.mxu0
        %1525 = vmatpush.bf16.msra.mxu0 0
        %1526 = vmatpush.bf16.msra.mxu0 0
        %1527 = vmatpush.bf16.msra.mxu0 0
        %1528 = vmatpush.bf16.msra.mxu0 0
        %1529 = vmatpush.bf16.msra.mxu0 0
        %1530 = vmatpush.bf16.msra.mxu0 0
        %1531 = vmatpush.bf16.msra.mxu0 %v1304
        %1532 = vmatpush.bf16.msra.mxu0 %v1301
        %1533 = vmatmul.bf16.gmra.mxu0 %v1368
        %v1534 = vpop.f32.mrf.mxu0
        %v1535 = vadd.f32 %v1516, %v1534
        %v1536 = vpop.f32.mrf.mxu0
        %v1537 = vadd.f32 %v1518, %v1536
        %1538 = vmatmul.bf16.gmra.mxu0 %v1371
        %v1539 = vpop.f32.mrf.mxu0
        %v1540 = vadd.f32 %v1521, %v1539
        %v1541 = vpop.f32.mrf.mxu0
        %v1542 = vadd.f32 %v1523, %v1541
        %1543 = vdwg.mxu0
        %v1544 = vmul.f32 %v1421, %v945
        %v1545 = vmul.f32 %v1478, %v946
        %v1546 = vmul.f32 %v1535, %v947
        %v1547 = vmul.f32 %v1423, %v945
        %v1548 = vmul.f32 %v1480, %v946
        %v1549 = vmul.f32 %v1537, %v947
        %v1550 = vmul.f32 %v1426, %v945
        %v1551 = vmul.f32 %v1483, %v946
        %v1552 = vmul.f32 %v1540, %v947
        %v1553 = vmul.f32 %v1428, %v945
        %v1554 = vmul.f32 %v1485, %v946
        %v1555 = vmul.f32 %v1542, %v947
        %v1556 = vadd.f32 %v1544, %v1545
        %v1557 = vadd.f32 %v1556, %v1546
        %1558 = vadd.xlane.f32.xlu0 %v1557
        %v1559 = vpop.xlane.xlu0 %1558
        %v1560 = vadd.f32 %v1547, %v1548
        %v1561 = vadd.f32 %v1560, %v1549
        %1562 = vadd.xlane.f32.xlu0 %v1561
        %v1563 = vpop.xlane.xlu0 %1562
        %v1564 = vadd.f32 %v1550, %v1551
        %v1565 = vadd.f32 %v1564, %v1552
        %1566 = vadd.xlane.f32.xlu0 %v1565
        %v1567 = vpop.xlane.xlu0 %1566
        %v1568 = vadd.f32 %v1553, %v1554
        %v1569 = vadd.f32 %v1568, %v1555
        %1570 = vadd.xlane.f32.xlu0 %v1569
        %v1571 = vpop.xlane.xlu0 %1570
        %v1572 = vld [vmem:[%s6] sm:$0xff]
        %v1573 = vld [vmem:[%s6 + $0x8] sm:$0xff]
        %v1574 = vld [vmem:[%s6 + $0x10] sm:$0xff]
        %v1575 = vld [vmem:[%s6 + $0x18] sm:$0xff]
        %v1576 = vmul.f32 %v1572, %v1559
        %v1577 = vmul.f32 %v1573, %v1563
        %v1578 = vmul.f32 %v1574, %v1567
        %v1579 = vmul.f32 %v1575, %v1571
        %vm1580 = vcmask 15360
        %v1581 = vsel %vm1580, %v1576, 0.0
        %v1582 = vsel %vm1580, %v1577, 0.0
        %v1583 = vadd.f32 %v1581, %v1582
        %v1584 = vsel %vm1580, %v1578, 0.0
        %v1585 = vadd.f32 %v1583, %v1584
        %v1586 = vsel %vm1580, %v1579, 0.0
        %v1587 = vadd.f32 %v1585, %v1586
        %v1588 = vrot.slane %v1587, 4
        %v1589 = vadd.f32 %v1587, %v1588
        %v1590 = vrot.slane %v1589, 2
        %v1591 = vadd.f32 %v1589, %v1590
        %v1592 = vrot.slane %v1591, 1
        %v1593 = vadd.f32 %v1591, %v1592
        %v1594 = vmax.f32 %v1593, 0.0
        %v1595 = vld [vmem:[%s7] sm:$0xff]
        %v1596 = vld [vmem:[%s7 + $0x8] sm:$0xff]
        %v1597 = vld [vmem:[%s7 + $0x10] sm:$0xff]
        %v1598 = vld [vmem:[%s7 + $0x18] sm:$0xff]
        %v1599 = vmul.f32 %v1595, %v1594
        %v1600 = vmul.f32 %v1596, %v1594
        %v1601 = vmul.f32 %v1597, %v1594
        %v1602 = vmul.f32 %v1598, %v1594
        %v1603 = vsel %vm1580, %v1599, 0.0
        %1604 = vadd.xlane.f32.xlu0 %v1603
        %v1605 = vpop.xlane.xlu0 %1604
        %v1606 = vsel %vm1580, %v1600, 0.0
        %1607 = vadd.xlane.f32.xlu0 %v1606
        %v1608 = vpop.xlane.xlu0 %1607
        %v1609 = vsel %vm1580, %v1601, 0.0
        %1610 = vadd.xlane.f32.xlu0 %v1609
        %v1611 = vpop.xlane.xlu0 %1610
        %v1612 = vsel %vm1580, %v1602, 0.0
        %1613 = vadd.xlane.f32.xlu0 %v1612
        %v1614 = vpop.xlane.xlu0 %1613
        %v1615 = vxor.u32 %v1605, 2147483648
        %v1616 = vxor.u32 %v1608, 2147483648
        %v1617 = vxor.u32 %v1611, 2147483648
        %v1618 = vxor.u32 %v1614, 2147483648
        %v1619 = vmul.f32 %v1615, 1.442695
        %v1620 = vpow.pop %v1619
        %v1621 = vmul.f32 %v1616, 1.442695
        %v1622 = vpow.pop %v1621
        %v1623 = vmul.f32 %v1617, 1.442695
        %v1624 = vpow.pop %v1623
        %v1625 = vmul.f32 %v1618, 1.442695
        %v1626 = vpow.pop %v1625
        %v1627 = vadd.f32 %v1620, 1.0
        %v1628 = vadd.f32 %v1622, 1.0
        %v1629 = vadd.f32 %v1624, 1.0
        %v1630 = vadd.f32 %v1626, 1.0
        %v1631 = vrcp.pop %v1627
        %v1632 = vmul.f32 %v1627, %v1631
        %v1633 = vsub.f32 1.0, %v1632
        %v1634 = vmul.f32 %v1631, %v1633
        %v1635 = vadd.f32 %v1631, %v1634
        %vm1636 = vweird.f32 %v1627
        %vm1637 = vweird.f32 %v1631
        %vm1638 = vmor %vm1636, %vm1637
        %v1639 = vsel %vm1638, %v1631, %v1635
        %v1640 = vand.u32 2147483647, %v1627
        %vm1641 = vcmp.eq.f32.partialorder %v1640, 8.507059e+37
        %v1642 = vand.u32 %v1627, 2147483648
        %v1643 = vor.u32 1.1754944e-38, %v1642
        %v1644 = vsel %vm1641, %v1643, %v1639
        %v1645 = vmul.f32 1.0, %v1644
        %v1646 = vrcp.pop %v1628
        %v1647 = vmul.f32 %v1628, %v1646
        %v1648 = vsub.f32 1.0, %v1647
        %v1649 = vmul.f32 %v1646, %v1648
        %v1650 = vadd.f32 %v1646, %v1649
        %vm1651 = vweird.f32 %v1628
        %vm1652 = vweird.f32 %v1646
        %vm1653 = vmor %vm1651, %vm1652
        %v1654 = vsel %vm1653, %v1646, %v1650
        %v1655 = vand.u32 2147483647, %v1628
        %vm1656 = vcmp.eq.f32.partialorder %v1655, 8.507059e+37
        %v1657 = vand.u32 %v1628, 2147483648
        %v1658 = vor.u32 1.1754944e-38, %v1657
        %v1659 = vsel %vm1656, %v1658, %v1654
        %v1660 = vmul.f32 1.0, %v1659
        %v1661 = vrcp.pop %v1629
        %v1662 = vmul.f32 %v1629, %v1661
        %v1663 = vsub.f32 1.0, %v1662
        %v1664 = vmul.f32 %v1661, %v1663
        %v1665 = vadd.f32 %v1661, %v1664
        %vm1666 = vweird.f32 %v1629
        %vm1667 = vweird.f32 %v1661
        %vm1668 = vmor %vm1666, %vm1667
        %v1669 = vsel %vm1668, %v1661, %v1665
        %v1670 = vand.u32 2147483647, %v1629
        %vm1671 = vcmp.eq.f32.partialorder %v1670, 8.507059e+37
        %v1672 = vand.u32 %v1629, 2147483648
        %v1673 = vor.u32 1.1754944e-38, %v1672
        %v1674 = vsel %vm1671, %v1673, %v1669
        %v1675 = vmul.f32 1.0, %v1674
        %v1676 = vrcp.pop %v1630
        %v1677 = vmul.f32 %v1630, %v1676
        %v1678 = vsub.f32 1.0, %v1677
        %v1679 = vmul.f32 %v1676, %v1678
        %v1680 = vadd.f32 %v1676, %v1679
        %vm1681 = vweird.f32 %v1630
        %vm1682 = vweird.f32 %v1676
        %vm1683 = vmor %vm1681, %vm1682
        %v1684 = vsel %vm1683, %v1676, %v1680
        %v1685 = vand.u32 2147483647, %v1630
        %vm1686 = vcmp.eq.f32.partialorder %v1685, 8.507059e+37
        %v1687 = vand.u32 %v1630, 2147483648
        %v1688 = vor.u32 1.1754944e-38, %v1687
        %v1689 = vsel %vm1686, %v1688, %v1684
        %v1690 = vmul.f32 1.0, %v1689
        %v1691 = vmul.f32 %v1421, %v1645
        %v1692 = vmul.f32 %v1478, %v1645
        %v1693 = vmul.f32 %v1535, %v1645
        %v1694 = vmul.f32 %v1423, %v1660
        %v1695 = vmul.f32 %v1480, %v1660
        %v1696 = vmul.f32 %v1537, %v1660
        %v1697 = vmul.f32 %v1426, %v1675
        %v1698 = vmul.f32 %v1483, %v1675
        %v1699 = vmul.f32 %v1540, %v1675
        %v1700 = vmul.f32 %v1428, %v1690
        %v1701 = vmul.f32 %v1485, %v1690
        %v1702 = vmul.f32 %v1542, %v1690
        %v1703 = vadd.f32 %v1691, %v327
        %v1704 = vadd.f32 %v1692, %v328
        %v1705 = vadd.f32 %v1693, %v329
        %v1706 = vadd.f32 %v1694, %v330
        %v1707 = vadd.f32 %v1695, %v331
        %v1708 = vadd.f32 %v1696, %v332
        %v1709 = vadd.f32 %v1697, %v333
        %v1710 = vadd.f32 %v1698, %v334
        %v1711 = vadd.f32 %v1699, %v335
        %v1712 = vadd.f32 %v1700, %v336
        %v1713 = vadd.f32 %v1701, %v337
        %v1714 = vadd.f32 %v1702, %v338
        %v1715 = vmax.f32 %v1703, 0.0
        %v1716 = vmax.f32 %v1704, 0.0
        %v1717 = vmax.f32 %v1705, 0.0
        %v1718 = vmax.f32 %v1706, 0.0
        %v1719 = vmax.f32 %v1707, 0.0
        %v1720 = vmax.f32 %v1708, 0.0
        %v1721 = vmax.f32 %v1709, 0.0
        %v1722 = vmax.f32 %v1710, 0.0
        %v1723 = vmax.f32 %v1711, 0.0
        %v1724 = vmax.f32 %v1712, 0.0
        %v1725 = vmax.f32 %v1713, 0.0
        %v1726 = vmax.f32 %v1714, 0.0
        %1727 = vst [vmem:[%s325] sm:$0xff] %v1715
        %1728 = vst [vmem:[%s325 + $0x8] sm:$0xff] %v1716
        %1729 = vst [vmem:[%s325 + $0x10] sm:$0xff] %v1717
        %1730 = vst [vmem:[%s325 + $0x18] sm:$0xff] %v1718
        %1731 = vst [vmem:[%s325 + $0x20] sm:$0xff] %v1719
        %1732 = vst [vmem:[%s325 + $0x28] sm:$0xff] %v1720
        %1733 = vst [vmem:[%s325 + $0x30] sm:$0xff] %v1721
        %1734 = vst [vmem:[%s325 + $0x38] sm:$0xff] %v1722
        %1735 = vst [vmem:[%s325 + $0x40] sm:$0xff] %v1723
        %1736 = vst [vmem:[%s325 + $0x48] sm:$0xff] %v1724
        %1737 = vst [vmem:[%s325 + $0x50] sm:$0xff] %v1725
        %1738 = vst [vmem:[%s325 + $0x58] sm:$0xff] %v1726
        %s1739 = sand.u32 %s206, 1
        %s1740 = scalar_lea.sflag [#allocation4], %s1739
        %s1741 = sand.u32 %s206, 1
        %s1742 = smul.addr %s1741, 96
        %s1743 = scalar_lea.vmem [#allocation5], %s1742
        // Predicated region
        $region57: #{tpu_custom_call.1} parent=51 // pred_check
          %p1744 = pneg %p216
        $region58: #{tpu_custom_call.1} parent=51 // pred_check_branch
          %1746 = sbr.rel (%p1744) target = $region60
        $region59: #{tpu_custom_call.1} parent=51 // pred_region
          %1748 = vsyncadd %s1740, 0
          %s1749 = smul.addr %s25, 12
          %s1750 = smul.addr %s1749, 8
          %s1751 = scalar_lea.hbm %s8, %s1750
          %s1752 = sshll.u32 %s1743, 4
          %s1753 = int_to_ptr.vmem [resolvable:$true] %s1752
          %s1754 = sshll.u32 %s1751, 4
          %s1755 = int_to_ptr.hbm [resolvable:$true] %s1754
          %1760 = dma.vmem_to_hbm [thread:$0]  %s1753, 1536, %s1755, %s1740, 384, 384, 24
        $region60: #{tpu_custom_call.1} parent=51 // pred_fallthru
          _
      $region52: #{tpu_custom_call.1} parent=5 // pred_fallthru
        _
      %p1761 = scmp.le.s32.totalorder 2, %s20
      // Predicated region
      $region61: #{tpu_custom_call.1} parent=5 // pred_check
        %p1762 = pneg %p1761
      $region62: #{tpu_custom_call.1} parent=5 // pred_check_branch
        %1764 = sbr.rel (%p1762) target = $region64
      $region63: #{tpu_custom_call.1} parent=5 // pred_region
        %s1765 = ssub.s32 %s20, 2
        // Predicated region
        $region65: #{tpu_custom_call.1} parent=63 // pred_check
          %p1766 = pneg %p222
        $region66: #{tpu_custom_call.1} parent=63 // pred_check_branch
          %1768 = sbr.rel (%p1766) target = $region68
        $region67: #{tpu_custom_call.1} parent=63 // pred_region
          %s1769 = sand.u32 %s207, 1
          %s1770 = scalar_lea.sflag [#allocation4], %s1769
          %s1771 = sand.u32 %s207, 1
          %s1772 = smul.addr %s1771, 96
          %s1773 = scalar_lea.vmem [#allocation5], %s1772
          %1775 = dma.done %s1770, 1536
        $region68: #{tpu_custom_call.1} parent=63 // pred_fallthru
          _
      $region64: #{tpu_custom_call.1} parent=5 // pred_fallthru
        _
    $region6: #{tpu_custom_call.1} parent=1 // loop_footer
      %s24 = sadd.s32 1, %s20
    $region7: #{tpu_custom_call.1} parent=1 // loop_footer_branch
      %19 = sbr.rel target = $region3
    $region8: #{tpu_custom_call.1} parent=1 // loop_exit
      _
    %1776 = vsyncpa [#allocation3], 1
    %s1777 = scalar_lea.sflag [#allocation3], 1
    %1778 = vsyncpa %s1777, 1
    %1779 = vsyncpa [#allocation4], 1
    %s1780 = scalar_lea.sflag [#allocation4], 1
    %1781 = vsyncpa %s1780, 1

</llo_original>
